<compile_context>
chip_gen: v7x
topology: tpu7x:2x2x1
jax: 0.10.0
libtpu: 0.0.40
codegen_flags: <defaults>
</compile_context>

<pallas_src>
import math
from functools import partial

import jax
import jax.numpy as jnp
from jax.experimental import pallas as pl
from jax.experimental.pallas import tpu as pltpu


def _round_up(n, m):
    return ((n + m - 1) // m) * m


def mlp_kernel(x_ref, w1_ref, b1_ref, w2_ref, b2_ref, wc_ref, bc_ref, o_ref):
    # x tile: (TB, Din); cast to the matmul dtype (bf16 by default) in VMEM.
    x = x_ref[...].astype(w1_ref.dtype)
    # hidden layer 1: Linear + ReLU (MXU matmul, f32 accumulation)
    h = jnp.dot(x, w1_ref[...], preferred_element_type=jnp.float32)
    h = jnp.maximum(h + b1_ref[...], 0.0)                          # (TB, H1)
    # hidden layer 2: Linear + ReLU
    h = jnp.dot(h.astype(w2_ref.dtype), w2_ref[...],
                preferred_element_type=jnp.float32)
    h = jnp.maximum(h + b2_ref[...], 0.0)                          # (TB, H2)
    # classifier head (output width 1): VPU multiply + XLU lane reduction
    # instead of an N=1 MXU matmul.  bc is an SMEM scalar.
    logits = jnp.sum(h * wc_ref[...].astype(jnp.float32), axis=-1)  # (TB,)
    probs = jax.nn.sigmoid(logits + bc_ref[0])                      # (TB,)
    # dense store: full (1, TB//128, 128) block -> unmasked full-vreg writes
    o_ref[...] = probs.reshape(o_ref.shape)


def model_binary_classification_forward(x, params, *, block_batch=4096,
                                        compute_dtype=jnp.bfloat16):
    """params = [(W1, b1), (W2, b2), (Wc, bc)] with W in (in, out), b in (1, out).

    compute_dtype: dtype used for the MXU matmul operands (weights + in-kernel
    x cast).  None -> use x.dtype (exact module semantics when x is f32).
    """
    (w1, b1), (w2, b2), (wc, bc) = params
    B, Din = x.shape
    H1, H2 = w1.shape[1], w2.shape[1]

    cdt = x.dtype if compute_dtype is None else jnp.dtype(compute_dtype)
    w1c = w1.astype(cdt)
    w2c = w2.astype(cdt)
    wc_row = wc.reshape(1, H2).astype(cdt)           # (1, H2) row for the head
    b1r = b1.reshape(1, H1).astype(jnp.float32)
    b2r = b2.reshape(1, H2).astype(jnp.float32)
    bc_s = bc.reshape(1).astype(jnp.float32)          # SMEM scalar

    # Tiny-batch corner: pad x up to a single 128-row tile (negligible bytes).
    if B < 128:
        x = jnp.pad(x, ((0, 128 - B), (0, 0)))
    Bx = x.shape[0]

    # Batch tile: multiple of 128, never larger than the batch (partial last
    # block handled by Pallas), capped at ~half the batch so the grid has >= 2
    # steps and the "parallel" axis feeds both v7x TensorCores.
    half = _round_up(-(-Bx // 2), 128)
    TB = max(128, min(_round_up(block_batch, 128), half, (Bx // 128) * 128))
    grid_len = pl.cdiv(Bx, TB)
    n_rows = TB // 128

    cost = pl.CostEstimate(
        flops=2 * Bx * (Din * H1 + H1 * H2 + H2),
        transcendentals=Bx,
        bytes_accessed=int(x.size * x.dtype.itemsize
                           + (w1c.size + w2c.size + wc_row.size) * cdt.itemsize
                           + (H1 + H2 + 1) * 4
                           + grid_len * n_rows * 128 * 4),
    )

    out3 = pl.pallas_call(
        mlp_kernel,
        out_shape=jax.ShapeDtypeStruct((grid_len, n_rows, 128), jnp.float32),
        grid=(grid_len,),
        in_specs=[
            pl.BlockSpec((TB, Din), lambda i: (i, 0)),     # x: streamed per tile
            pl.BlockSpec((Din, H1), lambda i: (0, 0)),     # weights/biases resident
            pl.BlockSpec((1, H1), lambda i: (0, 0)),
            pl.BlockSpec((H1, H2), lambda i: (0, 0)),
            pl.BlockSpec((1, H2), lambda i: (0, 0)),
            pl.BlockSpec((1, H2), lambda i: (0, 0)),
            pl.BlockSpec(memory_space=pltpu.MemorySpace.SMEM),   # bc scalar
        ],
        out_specs=pl.BlockSpec((1, n_rows, 128), lambda i: (i, 0, 0)),
        compiler_params=pltpu.CompilerParams(
            dimension_semantics=("parallel",)),                  # 2x on v7x megacore
        cost_estimate=cost,
    )(x, w1c, b1r, w2c, b2r, wc_row, bc_s)

    # Back to the module's (B, 1) layout (pure layout plumbing in the wrapper).
    return out3.reshape(-1, 1)[:B]


def xavier_uniform(key, fan_in, fan_out, dtype=jnp.float32):
    # Matches torch.nn.init.xavier_uniform_ bound = sqrt(6 / (fan_in + fan_out)).
    bound = math.sqrt(6.0 / (fan_in + fan_out))
    # Returned directly in (in, out) layout (transpose of PyTorch's (out, in)).
    return jax.random.uniform(key, (fan_in, fan_out), dtype=dtype,
                              minval=-bound, maxval=bound)


def init_params(key, in_features, hidden_sizes):
    hidden_list = list(map(int, hidden_sizes.split(",")))
    dims = [in_features] + hidden_list + [1]
    params = []
    keys = jax.random.split(key, len(dims) - 1)
    for k, (d_in, d_out) in zip(keys, zip(dims, dims[1:])):
        w = xavier_uniform(k, d_in, d_out)            # xavier_uniform_ on weights
        b = jnp.zeros((1, d_out), dtype=jnp.float32)  # zeros / constant(0) bias
        params.append((w, b))
    return params


def reference_forward(x, params):
    (w1, b1), (w2, b2), (wc, bc) = params
    h = jnp.maximum(x @ w1 + b1, 0.0)
    h = jnp.maximum(h @ w2 + b2, 0.0)
    return jax.nn.sigmoid(h @ wc + bc)


if __name__ == "__main__":
    in_features = 32
    hidden_sizes = "64,32"
    batch = 500   # deliberately NOT a multiple of 128 (ragged tail, masked block)

    key = jax.random.PRNGKey(0)
    kx, kp = jax.random.split(key)

    x = jax.random.normal(kx, (batch, in_features), dtype=jnp.float32)
    params = init_params(kp, in_features, hidden_sizes)

    ref = reference_forward(x, params)

    # Exact-semantics f32 path.
    fwd_f32 = jax.jit(partial(model_binary_classification_forward,
                              compute_dtype=jnp.float32))
    out_f32 = jax.block_until_ready(fwd_f32(x, params))
    assert out_f32.shape == (batch, 1), out_f32.shape
    assert jnp.allclose(out_f32, ref, atol=1e-5, rtol=1e-5)

    # Default path: bf16 matmul operands, f32 accumulation (looser tolerance).
    fwd = jax.jit(model_binary_classification_forward)
    out = jax.block_until_ready(fwd(x, params))
    assert out.shape == (batch, 1), out.shape
    assert jnp.allclose(out, ref, atol=3e-2, rtol=0.0)

    print("KERNEL_OK")
</pallas_src>

<mosaic_0001>
module attributes {stable_mosaic.version = 11 : i64} {
  func.func @mlp_kernel(%arg0: i32, %arg1: memref<256x32xf32, #tpu.memory_space<vmem>>, %arg2: memref<32x64xf32, #tpu.memory_space<vmem>>, %arg3: memref<1x64xf32, #tpu.memory_space<vmem>>, %arg4: memref<64x32xf32, #tpu.memory_space<vmem>>, %arg5: memref<1x32xf32, #tpu.memory_space<vmem>>, %arg6: memref<1x32xf32, #tpu.memory_space<vmem>>, %arg7: memref<1xf32, #tpu.memory_space<smem>>, %arg8: memref<1x2x128xf32, #tpu.memory_space<vmem>>) attributes {dimension_semantics = [#tpu.dimension_semantics<parallel>], iteration_bounds = array<i64: 2>, scalar_prefetch = 0 : i64, scratch_operands = 0 : i64, tpu.core_type = #tpu.core_type<tc>, window_params = [{transform_indices = @transform_0, window_bounds = array<i64: 256, 32>}, {pipeline_mode = #tpu.pipeline_mode<synchronous>, transform_indices = @transform_1, window_bounds = array<i64: 32, 64>}, {pipeline_mode = #tpu.pipeline_mode<synchronous>, transform_indices = @transform_2, window_bounds = array<i64: 1, 64>}, {pipeline_mode = #tpu.pipeline_mode<synchronous>, transform_indices = @transform_3, window_bounds = array<i64: 64, 32>}, {pipeline_mode = #tpu.pipeline_mode<synchronous>, transform_indices = @transform_4, window_bounds = array<i64: 1, 32>}, {pipeline_mode = #tpu.pipeline_mode<synchronous>, transform_indices = @transform_5, window_bounds = array<i64: 1, 32>}, {transform_indices = @transform_6, window_bounds = array<i64: 1>}, {transform_indices = @transform_7, window_bounds = array<i64: 1, 2, 128>}]} {
    %c0 = arith.constant 0 : index
    %c0_0 = arith.constant 0 : index
    %0 = vector.load %arg1[%c0, %c0_0] : memref<256x32xf32, #tpu.memory_space<vmem>>, vector<256x32xf32>
    %c0_1 = arith.constant 0 : index
    %c0_2 = arith.constant 0 : index
    %1 = vector.load %arg2[%c0_1, %c0_2] : memref<32x64xf32, #tpu.memory_space<vmem>>, vector<32x64xf32>
    %cst = arith.constant dense<0.000000e+00> : vector<256x64xf32>
    %2 = tpu.matmul %0, %1, %cst {dimension_numbers = #tpu.dot_dimension_numbers<[1], [0], [0], [1], [0, 0, 1, 1], [], []>} : vector<256x32xf32>, vector<32x64xf32>, vector<256x64xf32> -> vector<256x64xf32>
    %c0_3 = arith.constant 0 : index
    %c0_4 = arith.constant 0 : index
    %3 = vector.load %arg3[%c0_3, %c0_4] : memref<1x64xf32, #tpu.memory_space<vmem>>, vector<1x64xf32>
    %4 = vector.broadcast %3 : vector<1x64xf32> to vector<256x64xf32>
    %5 = arith.addf %2, %4 : vector<256x64xf32>
    %cst_5 = arith.constant 0.000000e+00 : f32
    %6 = vector.broadcast %cst_5 : f32 to vector<256x64xf32>
    %7 = arith.maximumf %5, %6 : vector<256x64xf32>
    %c0_6 = arith.constant 0 : index
    %c0_7 = arith.constant 0 : index
    %8 = vector.load %arg4[%c0_6, %c0_7] : memref<64x32xf32, #tpu.memory_space<vmem>>, vector<64x32xf32>
    %cst_8 = arith.constant dense<0.000000e+00> : vector<256x32xf32>
    %9 = tpu.matmul %7, %8, %cst_8 {dimension_numbers = #tpu.dot_dimension_numbers<[1], [0], [0], [1], [0, 0, 1, 1], [], []>} : vector<256x64xf32>, vector<64x32xf32>, vector<256x32xf32> -> vector<256x32xf32>
    %c0_9 = arith.constant 0 : index
    %c0_10 = arith.constant 0 : index
    %10 = vector.load %arg5[%c0_9, %c0_10] : memref<1x32xf32, #tpu.memory_space<vmem>>, vector<1x32xf32>
    %11 = vector.broadcast %10 : vector<1x32xf32> to vector<256x32xf32>
    %12 = arith.addf %9, %11 : vector<256x32xf32>
    %cst_11 = arith.constant 0.000000e+00 : f32
    %13 = vector.broadcast %cst_11 : f32 to vector<256x32xf32>
    %14 = arith.maximumf %12, %13 : vector<256x32xf32>
    %c0_12 = arith.constant 0 : index
    %c0_13 = arith.constant 0 : index
    %15 = vector.load %arg6[%c0_12, %c0_13] : memref<1x32xf32, #tpu.memory_space<vmem>>, vector<1x32xf32>
    %16 = vector.broadcast %15 : vector<1x32xf32> to vector<256x32xf32>
    %17 = arith.mulf %14, %16 : vector<256x32xf32>
    %cst_14 = arith.constant dense<0.000000e+00> : vector<256xf32>
    %18 = vector.multi_reduction <add>, %17, %cst_14 [1] : vector<256x32xf32> to vector<256xf32>
    %c0_15 = arith.constant 0 : index
    %19 = memref.load %arg7[%c0_15] : memref<1xf32, #tpu.memory_space<smem>>
    %20 = vector.broadcast %19 : f32 to vector<256xf32>
    %21 = arith.addf %18, %20 : vector<256xf32>
    %22 = arith.negf %21 : vector<256xf32>
    %23 = math.exp %22 : vector<256xf32>
    %cst_16 = arith.constant 1.000000e+00 : f32
    %24 = vector.broadcast %cst_16 : f32 to vector<256xf32>
    %25 = arith.addf %24, %23 : vector<256xf32>
    %26 = arith.divf %24, %25 : vector<256xf32>
    %27 = vector.shape_cast %26 : vector<256xf32> to vector<1x2x128xf32>
    %c0_17 = arith.constant 0 : index
    %c0_18 = arith.constant 0 : index
    %c0_19 = arith.constant 0 : index
    %28 = vector.load %arg8[%c0_17, %c0_18, %c0_19] : memref<1x2x128xf32, #tpu.memory_space<vmem>>, vector<1x2x128xf32>
    tpu.vector_store %arg8[%c0_17, %c0_18, %c0_19], %27 {strides = array<i32>} : memref<1x2x128xf32, #tpu.memory_space<vmem>>, vector<1x2x128xf32>,
    return
  }
  func.func @transform_0(%arg0: i32) -> (i32, i32) {
    %c0_i32 = arith.constant 0 : i32
    %c0_i32_0 = arith.constant 0 : i32
    return %arg0, %c0_i32 : i32, i32
  }
  func.func @transform_1(%arg0: i32) -> (i32, i32) {
    %c0_i32 = arith.constant 0 : i32
    %c0_i32_0 = arith.constant 0 : i32
    %c0_i32_1 = arith.constant 0 : i32
    return %c0_i32, %c0_i32_0 : i32, i32
  }
  func.func @transform_2(%arg0: i32) -> (i32, i32) {
    %c0_i32 = arith.constant 0 : i32
    %c0_i32_0 = arith.constant 0 : i32
    %c0_i32_1 = arith.constant 0 : i32
    return %c0_i32, %c0_i32_0 : i32, i32
  }
  func.func @transform_3(%arg0: i32) -> (i32, i32) {
    %c0_i32 = arith.constant 0 : i32
    %c0_i32_0 = arith.constant 0 : i32
    %c0_i32_1 = arith.constant 0 : i32
    return %c0_i32, %c0_i32_0 : i32, i32
  }
  func.func @transform_4(%arg0: i32) -> (i32, i32) {
    %c0_i32 = arith.constant 0 : i32
    %c0_i32_0 = arith.constant 0 : i32
    %c0_i32_1 = arith.constant 0 : i32
    return %c0_i32, %c0_i32_0 : i32, i32
  }
  func.func @transform_5(%arg0: i32) -> (i32, i32) {
    %c0_i32 = arith.constant 0 : i32
    %c0_i32_0 = arith.constant 0 : i32
    %c0_i32_1 = arith.constant 0 : i32
    return %c0_i32, %c0_i32_0 : i32, i32
  }
  func.func @transform_6(%arg0: i32) -> i32 {
    %c0_i32 = arith.constant 0 : i32
    %c0_i32_0 = arith.constant 0 : i32
    return %c0_i32 : i32
  }
  func.func @transform_7(%arg0: i32) -> (i32, i32, i32) {
    %c0_i32 = arith.constant 0 : i32
    %c0_i32_0 = arith.constant 0 : i32
    %c0_i32_1 = arith.constant 0 : i32
    return %arg0, %c0_i32, %c0_i32_0 : i32, i32, i32
  }
}

</mosaic_0001>

<llo_original>
// kernel: model_binary_classification_forward.1
$region0: #{model_binary_classification_forward.1}
  #allocation0 [shape = 'u32[]', space=smem, size = 0x4, offset = 0x4, fixed_abs, tag = 'smem constant byte address 0x4 - core index']
  #allocation1 [shape = 'u32[144,128]{1,0:T(1,128)}', space=vmem, size = 0x12000, scoped, tag = 'internal scratch']
  #allocation2 [shape = 'f32[1]{0:T(128)S(6)}', space=smem, size = 0x200, scoped, tag = 'scoped memory for model_binary_classification_forward.1']
  %s0 = inlined_call_operand.vmem [shape: f32[500,32], index: 0, kind: input, shape index: {}]
  %s1 = inlined_call_operand.vmem [shape: f32[32,64], index: 1, kind: input, shape index: {}]
  %s2 = inlined_call_operand.vmem [shape: f32[1,64], index: 2, kind: input, shape index: {}]
  %s3 = inlined_call_operand.vmem [shape: f32[64,32], index: 3, kind: input, shape index: {}]
  %s4 = inlined_call_operand.vmem [shape: f32[1,32], index: 4, kind: input, shape index: {}]
  %s5 = inlined_call_operand.vmem [shape: f32[1,32], index: 5, kind: input, shape index: {}]
  %s6 = inlined_call_operand.<no memory space> [shape: f32[1], index: 6, kind: input, shape index: {}]
  %s7 = inlined_call_operand.hbm [shape: f32[2,2,128], index: 7, kind: output, shape index: {}]
  %s8 = sld [smem:[#allocation0]]
  $region61: #{model_binary_classification_forward.1} parent=0
    _
  %s10 = ssub.s32 1, %s8
  %s11 = scalar_select 0, %s10, %s8
  %12 = sst [smem:[#allocation2]] %s6
  $region1: #{model_binary_classification_forward.1} parent=0
    #allocation3 [shape = 'u8[2048]{0}', space=vmem, size = 0x800, scoped, tag = 'output window, operand 0']
    #allocation4 [shape = 's32[2]{0}', space=sflag, size = 0x8, scoped, tag = 'scoped memory for model_binary_classification_forward.1']
    %13 = vsyncpa [#allocation4], 0
    %s14 = scalar_lea.sflag [#allocation4], 1
    %15 = vsyncpa %s14, 0
    loop: start=0, step=1, limit=4
    $region2: #{model_binary_classification_forward.1} parent=1 // loop_pre_header
      _
    $region3: #{model_binary_classification_forward.1} parent=1 // loop_header
      %s17 = sphi 0, %s21
      %p18 = scmp.ge.s32.totalorder %s17, 4
      %s27 = sphi 0, %s29
      %s30 = sphi 0, %s27
      %s31 = sphi 0, %s30
      %s47 = sphi 0, %s31
      %s51 = sphi 0, %s51
      %s53 = sphi 0, %s51
      %s54 = sphi 0, %s53
      %s68 = sphi 0, %s54
      %s72 = sphi 0, %s72
      %s74 = sphi 0, %s72
      %s75 = sphi 0, %s74
      %s89 = sphi 0, %s75
      %s93 = sphi 0, %s93
      %s95 = sphi 0, %s93
      %s96 = sphi 0, %s95
      %s110 = sphi 0, %s96
      %s114 = sphi 0, %s114
      %s116 = sphi 0, %s114
      %s117 = sphi 0, %s116
      %s131 = sphi 0, %s117
      %s135 = sphi 0, %s135
      %s137 = sphi 0, %s135
      %s138 = sphi 0, %s137
      %s152 = sphi 0, %s138
      %s156 = sphi 0, %s156
      %s158 = sphi 0, %s156
      %s159 = sphi 0, %s158
      %s173 = sphi 0, %s159
      %s179 = sphi 0, %s181
      %s182 = sphi 0, %s179
      %s183 = sphi 0, %s182
      %s199 = sphi 0, %s183
    $region4: #{model_binary_classification_forward.1} parent=1 // loop_header_branch
      %20 = sbr.rel (%p18) target = $region8
    $region5: #{model_binary_classification_forward.1} parent=1 // loop_body
      %s22 = ssub.s32 %s17, 1
      %s23 = ssub.s32 %s17, 2
      %s24 = sadd.s32 %s17, 1
      %s25 = ssub.s32 %s17, %s24
      %p26 = scmp.eq.s32.totalorder %s25, 0
      %s28 = sadd.s32 %s27, 1
      %s29 = scalar_select %p26, %s27, %s28
      %p32 = pneg %p26
      %p33 = scmp.eq.s32.totalorder %s17, 1
      %p34 = por %p32, %p33
      %p35 = scmp.ne.s32.totalorder %s27, %s30
      %p36 = scmp.eq.s32.totalorder %s17, 0
      %p37 = por %p35, %p36
      %p38 = scmp.ne.s32.totalorder %s27, %s30
      %p39 = scmp.eq.s32.totalorder %s22, 1
      %p40 = por %p38, %p39
      %p41 = scmp.ne.s32.totalorder %s30, %s31
      %p42 = scmp.eq.s32.totalorder %s22, 0
      %p43 = por %p41, %p42
      %p44 = scmp.ne.s32.totalorder %s30, %s31
      %p45 = scmp.eq.s32.totalorder %s23, 1
      %p46 = por %p44, %p45
      %p48 = scmp.ne.s32.totalorder %s31, %s47
      %p49 = scmp.eq.s32.totalorder %s23, 0
      %p50 = por %p48, %p49
      %s52 = sadd.s32 %s51, 1
      %p55 = scmp.eq.s32.totalorder %s17, 1
      %p56 = scmp.ne.s32.totalorder %s51, %s53
      %p57 = scmp.eq.s32.totalorder %s17, 0
      %p58 = por %p56, %p57
      %p59 = scmp.ne.s32.totalorder %s51, %s53
      %p60 = scmp.eq.s32.totalorder %s22, 1
      %p61 = por %p59, %p60
      %p62 = scmp.ne.s32.totalorder %s53, %s54
      %p63 = scmp.eq.s32.totalorder %s22, 0
      %p64 = por %p62, %p63
      %p65 = scmp.ne.s32.totalorder %s53, %s54
      %p66 = scmp.eq.s32.totalorder %s23, 1
      %p67 = por %p65, %p66
      %p69 = scmp.ne.s32.totalorder %s54, %s68
      %p70 = scmp.eq.s32.totalorder %s23, 0
      %p71 = por %p69, %p70
      %s73 = sadd.s32 %s72, 1
      %p76 = scmp.eq.s32.totalorder %s17, 1
      %p77 = scmp.ne.s32.totalorder %s72, %s74
      %p78 = scmp.eq.s32.totalorder %s17, 0
      %p79 = por %p77, %p78
      %p80 = scmp.ne.s32.totalorder %s72, %s74
      %p81 = scmp.eq.s32.totalorder %s22, 1
      %p82 = por %p80, %p81
      %p83 = scmp.ne.s32.totalorder %s74, %s75
      %p84 = scmp.eq.s32.totalorder %s22, 0
      %p85 = por %p83, %p84
      %p86 = scmp.ne.s32.totalorder %s74, %s75
      %p87 = scmp.eq.s32.totalorder %s23, 1
      %p88 = por %p86, %p87
      %p90 = scmp.ne.s32.totalorder %s75, %s89
      %p91 = scmp.eq.s32.totalorder %s23, 0
      %p92 = por %p90, %p91
      %s94 = sadd.s32 %s93, 1
      %p97 = scmp.eq.s32.totalorder %s17, 1
      %p98 = scmp.ne.s32.totalorder %s93, %s95
      %p99 = scmp.eq.s32.totalorder %s17, 0
      %p100 = por %p98, %p99
      %p101 = scmp.ne.s32.totalorder %s93, %s95
      %p102 = scmp.eq.s32.totalorder %s22, 1
      %p103 = por %p101, %p102
      %p104 = scmp.ne.s32.totalorder %s95, %s96
      %p105 = scmp.eq.s32.totalorder %s22, 0
      %p106 = por %p104, %p105
      %p107 = scmp.ne.s32.totalorder %s95, %s96
      %p108 = scmp.eq.s32.totalorder %s23, 1
      %p109 = por %p107, %p108
      %p111 = scmp.ne.s32.totalorder %s96, %s110
      %p112 = scmp.eq.s32.totalorder %s23, 0
      %p113 = por %p111, %p112
      %s115 = sadd.s32 %s114, 1
      %p118 = scmp.eq.s32.totalorder %s17, 1
      %p119 = scmp.ne.s32.totalorder %s114, %s116
      %p120 = scmp.eq.s32.totalorder %s17, 0
      %p121 = por %p119, %p120
      %p122 = scmp.ne.s32.totalorder %s114, %s116
      %p123 = scmp.eq.s32.totalorder %s22, 1
      %p124 = por %p122, %p123
      %p125 = scmp.ne.s32.totalorder %s116, %s117
      %p126 = scmp.eq.s32.totalorder %s22, 0
      %p127 = por %p125, %p126
      %p128 = scmp.ne.s32.totalorder %s116, %s117
      %p129 = scmp.eq.s32.totalorder %s23, 1
      %p130 = por %p128, %p129
      %p132 = scmp.ne.s32.totalorder %s117, %s131
      %p133 = scmp.eq.s32.totalorder %s23, 0
      %p134 = por %p132, %p133
      %s136 = sadd.s32 %s135, 1
      %p139 = scmp.eq.s32.totalorder %s17, 1
      %p140 = scmp.ne.s32.totalorder %s135, %s137
      %p141 = scmp.eq.s32.totalorder %s17, 0
      %p142 = por %p140, %p141
      %p143 = scmp.ne.s32.totalorder %s135, %s137
      %p144 = scmp.eq.s32.totalorder %s22, 1
      %p145 = por %p143, %p144
      %p146 = scmp.ne.s32.totalorder %s137, %s138
      %p147 = scmp.eq.s32.totalorder %s22, 0
      %p148 = por %p146, %p147
      %p149 = scmp.ne.s32.totalorder %s137, %s138
      %p150 = scmp.eq.s32.totalorder %s23, 1
      %p151 = por %p149, %p150
      %p153 = scmp.ne.s32.totalorder %s138, %s152
      %p154 = scmp.eq.s32.totalorder %s23, 0
      %p155 = por %p153, %p154
      %s157 = sadd.s32 %s156, 1
      %p160 = scmp.eq.s32.totalorder %s17, 1
      %p161 = scmp.ne.s32.totalorder %s156, %s158
      %p162 = scmp.eq.s32.totalorder %s17, 0
      %p163 = por %p161, %p162
      %p164 = scmp.ne.s32.totalorder %s156, %s158
      %p165 = scmp.eq.s32.totalorder %s22, 1
      %p166 = por %p164, %p165
      %p167 = scmp.ne.s32.totalorder %s158, %s159
      %p168 = scmp.eq.s32.totalorder %s22, 0
      %p169 = por %p167, %p168
      %p170 = scmp.ne.s32.totalorder %s158, %s159
      %p171 = scmp.eq.s32.totalorder %s23, 1
      %p172 = por %p170, %p171
      %p174 = scmp.ne.s32.totalorder %s159, %s173
      %p175 = scmp.eq.s32.totalorder %s23, 0
      %p176 = por %p174, %p175
      %s177 = ssub.s32 %s17, %s24
      %p178 = scmp.eq.s32.totalorder %s177, 0
      %s180 = sadd.s32 %s179, 1
      %s181 = scalar_select %p178, %s179, %s180
      %p184 = pneg %p178
      %p185 = scmp.eq.s32.totalorder %s17, 1
      %p186 = por %p184, %p185
      %p187 = scmp.ne.s32.totalorder %s179, %s182
      %p188 = scmp.eq.s32.totalorder %s17, 0
      %p189 = por %p187, %p188
      %p190 = scmp.ne.s32.totalorder %s179, %s182
      %p191 = scmp.eq.s32.totalorder %s22, 1
      %p192 = por %p190, %p191
      %p193 = scmp.ne.s32.totalorder %s182, %s183
      %p194 = scmp.eq.s32.totalorder %s22, 0
      %p195 = por %p193, %p194
      %p196 = scmp.ne.s32.totalorder %s182, %s183
      %p197 = scmp.eq.s32.totalorder %s23, 1
      %p198 = por %p196, %p197
      %p200 = scmp.ne.s32.totalorder %s183, %s199
      %p201 = scmp.eq.s32.totalorder %s23, 0
      %p202 = por %p200, %p201
      %p203 = scmp.le.s32.totalorder 1, %s17
      %p204 = scmp.lt.s32.totalorder %s17, 3
      %p205 = pnand %p203, %p204
      %p206 = pneg %p205
      // Predicated region
      $region9: #{model_binary_classification_forward.1} parent=5 // pred_check
        _
      $region10: #{model_binary_classification_forward.1} parent=5 // pred_check_branch
        %208 = sbr.rel (%p205) target = $region12
      $region11: #{model_binary_classification_forward.1} parent=5 // pred_region
        %s209 = ssub.s32 %s17, 1
        // Predicated region
        $region13: #{model_binary_classification_forward.1} parent=11 // pred_check
          %p210 = pneg %p64
        $region14: #{model_binary_classification_forward.1} parent=11 // pred_check_branch
          %212 = sbr.rel (%p210) target = $region16
        $region15: #{model_binary_classification_forward.1} parent=11 // pred_region
          _
        $region16: #{model_binary_classification_forward.1} parent=11 // pred_fallthru
          _
        // Predicated region
        $region17: #{model_binary_classification_forward.1} parent=11 // pred_check
          %p213 = pneg %p85
        $region18: #{model_binary_classification_forward.1} parent=11 // pred_check_branch
          %215 = sbr.rel (%p213) target = $region20
        $region19: #{model_binary_classification_forward.1} parent=11 // pred_region
          _
        $region20: #{model_binary_classification_forward.1} parent=11 // pred_fallthru
          _
        // Predicated region
        $region21: #{model_binary_classification_forward.1} parent=11 // pred_check
          %p216 = pneg %p106
        $region22: #{model_binary_classification_forward.1} parent=11 // pred_check_branch
          %218 = sbr.rel (%p216) target = $region24
        $region23: #{model_binary_classification_forward.1} parent=11 // pred_region
          _
        $region24: #{model_binary_classification_forward.1} parent=11 // pred_fallthru
          _
        // Predicated region
        $region25: #{model_binary_classification_forward.1} parent=11 // pred_check
          %p219 = pneg %p127
        $region26: #{model_binary_classification_forward.1} parent=11 // pred_check_branch
          %221 = sbr.rel (%p219) target = $region28
        $region27: #{model_binary_classification_forward.1} parent=11 // pred_region
          _
        $region28: #{model_binary_classification_forward.1} parent=11 // pred_fallthru
          _
        // Predicated region
        $region29: #{model_binary_classification_forward.1} parent=11 // pred_check
          %p222 = pneg %p148
        $region30: #{model_binary_classification_forward.1} parent=11 // pred_check_branch
          %224 = sbr.rel (%p222) target = $region32
        $region31: #{model_binary_classification_forward.1} parent=11 // pred_region
          _
        $region32: #{model_binary_classification_forward.1} parent=11 // pred_fallthru
          _
        // Predicated region
        $region33: #{model_binary_classification_forward.1} parent=11 // pred_check
          %p225 = pneg %p169
        $region34: #{model_binary_classification_forward.1} parent=11 // pred_check_branch
          %227 = sbr.rel (%p225) target = $region36
        $region35: #{model_binary_classification_forward.1} parent=11 // pred_region
          _
        $region36: #{model_binary_classification_forward.1} parent=11 // pred_fallthru
          _
      $region12: #{model_binary_classification_forward.1} parent=5 // pred_fallthru
        _
      %p228 = scmp.lt.s32.totalorder %s17, 2
      // Predicated region
      $region37: #{model_binary_classification_forward.1} parent=5 // pred_check
        %p229 = pneg %p228
      $region38: #{model_binary_classification_forward.1} parent=5 // pred_check_branch
        %231 = sbr.rel (%p229) target = $region40
      $region39: #{model_binary_classification_forward.1} parent=5 // pred_region
        // Predicated region
        $region41: #{model_binary_classification_forward.1} parent=39 // pred_check
          %p232 = pneg %p37
        $region42: #{model_binary_classification_forward.1} parent=39 // pred_check_branch
          %234 = sbr.rel (%p232) target = $region44
        $region43: #{model_binary_classification_forward.1} parent=39 // pred_region
          %s235 = smul.u32 32, %s17
          %s236 = ssub.s32 63, %s235
          %p237 = scmp.lt.s32.totalorder %s236, 32
          %s238 = scalar_select %p237, %s236, 32
          %s239 = smul.u32 128, %s238
          %p240 = scmp.lt.s32.totalorder %s235, 62
          %s241 = scalar_select %p240, %s235, 62
          %s242 = smul.addr %s241, 8
          %s243 = scalar_lea.vmem %s0, %s242
          %s244 = smul.u32 32, %s17
          %s245 = ssub.s32 63, %s244
          %p246 = scmp.lt.s32.totalorder %s245, 32
          %s247 = scalar_select %p246, %s245, 32
          %s248 = smul.u32 128, %s247
        $region44: #{model_binary_classification_forward.1} parent=39 // pred_fallthru
          _
      $region40: #{model_binary_classification_forward.1} parent=5 // pred_fallthru
        _
      %p249 = scmp.le.s32.totalorder 1, %s17
      %p250 = scmp.lt.s32.totalorder %s17, 3
      %p251 = pnand %p249, %p250
      %p252 = pneg %p251
      // Predicated region
      $region45: #{model_binary_classification_forward.1} parent=5 // pred_check
        _
      $region46: #{model_binary_classification_forward.1} parent=5 // pred_check_branch
        %254 = sbr.rel (%p251) target = $region48
      $region47: #{model_binary_classification_forward.1} parent=5 // pred_region
        %s255 = ssub.s32 %s17, 1
        %s256 = smul.u32 32, %s22
        %s257 = ssub.s32 63, %s256
        %p258 = scmp.lt.s32.totalorder %s257, 32
        %s259 = scalar_select %p258, %s257, 32
        %s260 = smul.u32 128, %s259
        %p261 = scmp.lt.s32.totalorder %s256, 62
        %s262 = scalar_select %p261, %s256, 62
        %s263 = smul.addr %s262, 8
        %s264 = scalar_lea.vmem %s0, %s263
        %p265 = pneg %p43
        %p266 = pneg %p40
        %p267 = pneg %p64
        %p268 = pneg %p61
        %p269 = pneg %p85
        %p270 = pneg %p82
        %p271 = pneg %p106
        %p272 = pneg %p103
        %p273 = pneg %p127
        %p274 = pneg %p124
        %p275 = pneg %p148
        %p276 = pneg %p145
        %p277 = pneg %p169
        %p278 = pneg %p166
        %p279 = pneg %p195
        %p280 = pneg %p192
        %s281 = sand.u32 %s182, 1
        %s282 = scalar_lea.sflag [#allocation4], %s281
        %s283 = sand.u32 %s182, 1
        %s284 = smul.addr %s283, 2
        %s285 = scalar_lea.vmem [#allocation3], %s284
        %s286 = smul.u32 32, %s22
        %s287 = ssub.s32 63, %s286
        %p288 = scmp.lt.s32.totalorder %s287, 32
        %s289 = scalar_select %p288, %s287, 32
        %s290 = smul.u32 128, %s289
        %p291 = scmp.lt.s32.totalorder %s286, 62
        %s292 = scalar_select %p291, %s286, 62
        %s293 = smul.addr %s292, 8
        %s294 = scalar_lea.vmem %s0, %s293
        %s295 = smul.u32 32, %s22
        %s296 = ssub.s32 63, %s295
        %p297 = scmp.lt.s32.totalorder %s296, 32
        %s298 = scalar_select %p297, %s296, 32
        %s299 = smul.u32 128, %s298
        %v300 = vld [vmem:[%s294] sm:$0xff]
        %v301 = vld [vmem:[%s294 + $0x8] sm:$0xff]
        %v302 = vld [vmem:[%s294 + $0x10] sm:$0xff]
        %v303 = vld [vmem:[%s294 + $0x18] sm:$0xff]
        %v304 = vld [vmem:[%s294 + $0x20] sm:$0xff]
        %v305 = vld [vmem:[%s294 + $0x28] sm:$0xff]
        %v306 = vld [vmem:[%s294 + $0x30] sm:$0xff]
        %v307 = vld [vmem:[%s294 + $0x38] sm:$0xff]
        %v308 = vld [vmem:[%s294 + $0x40] sm:$0xff]
        %v309 = vld [vmem:[%s294 + $0x48] sm:$0xff]
        %v310 = vld [vmem:[%s294 + $0x50] sm:$0xff]
        %v311 = vld [vmem:[%s294 + $0x58] sm:$0xff]
        %v312 = vld [vmem:[%s294 + $0x60] sm:$0xff]
        %v313 = vld [vmem:[%s294 + $0x68] sm:$0xff]
        %v314 = vld [vmem:[%s294 + $0x70] sm:$0xff]
        %v315 = vld [vmem:[%s294 + $0x78] sm:$0xff]
        %v316 = vld [vmem:[%s294 + $0x80] sm:$0xff]
        %v317 = vld [vmem:[%s294 + $0x88] sm:$0xff]
        %v318 = vld [vmem:[%s294 + $0x90] sm:$0xff]
        %v319 = vld [vmem:[%s294 + $0x98] sm:$0xff]
        %v320 = vld [vmem:[%s294 + $0xa0] sm:$0xff]
        %v321 = vld [vmem:[%s294 + $0xa8] sm:$0xff]
        %v322 = vld [vmem:[%s294 + $0xb0] sm:$0xff]
        %v323 = vld [vmem:[%s294 + $0xb8] sm:$0xff]
        %v324 = vld [vmem:[%s294 + $0xc0] sm:$0xff]
        %v325 = vld [vmem:[%s294 + $0xc8] sm:$0xff]
        %v326 = vld [vmem:[%s294 + $0xd0] sm:$0xff]
        %v327 = vld [vmem:[%s294 + $0xd8] sm:$0xff]
        %v328 = vld [vmem:[%s294 + $0xe0] sm:$0xff]
        %v329 = vld [vmem:[%s294 + $0xe8] sm:$0xff]
        %v330 = vld [vmem:[%s294 + $0xf0] sm:$0xff]
        %v331 = vld [vmem:[%s294 + $0xf8] sm:$0xff]
        %v332 = vld [vmem:[%s1] sm:$0xff]
        %v333 = vld [vmem:[%s1 + $0x8] sm:$0xff]
        %v334 = vld [vmem:[%s1 + $0x10] sm:$0xff]
        %v335 = vld [vmem:[%s1 + $0x18] sm:$0xff]
        %v336 = vld [vmem:[%s2] sm:$0x1]
        %v338 = vlaneseq
        %v339 = vshrl.u32 %v338, 7
        %v340 = vsub.s32 0, %v339
        %v341 = vrot.slane %v336, %v340
        %vm343 = vcmask 261120
        %v345 = vsel %vm343, %v300, 0
        %v348 = vsel %vm343, %v301, 0
        %v351 = vsel %vm343, %v302, 0
        %v354 = vsel %vm343, %v303, 0
        %v357 = vsel %vm343, %v304, 0
        %v360 = vsel %vm343, %v305, 0
        %v363 = vsel %vm343, %v306, 0
        %v366 = vsel %vm343, %v307, 0
        %v369 = vsel %vm343, %v308, 0
        %v372 = vsel %vm343, %v309, 0
        %v375 = vsel %vm343, %v310, 0
        %v378 = vsel %vm343, %v311, 0
        %v381 = vsel %vm343, %v312, 0
        %v384 = vsel %vm343, %v313, 0
        %v387 = vsel %vm343, %v314, 0
        %v390 = vsel %vm343, %v315, 0
        %v393 = vsel %vm343, %v316, 0
        %v396 = vsel %vm343, %v317, 0
        %v399 = vsel %vm343, %v318, 0
        %v402 = vsel %vm343, %v319, 0
        %v405 = vsel %vm343, %v320, 0
        %v408 = vsel %vm343, %v321, 0
        %v411 = vsel %vm343, %v322, 0
        %v414 = vsel %vm343, %v323, 0
        %v417 = vsel %vm343, %v324, 0
        %v420 = vsel %vm343, %v325, 0
        %v423 = vsel %vm343, %v326, 0
        %v426 = vsel %vm343, %v327, 0
        %v429 = vsel %vm343, %v328, 0
        %v432 = vsel %vm343, %v329, 0
        %v435 = vsel %vm343, %v330, 0
        %v438 = vsel %vm343, %v331, 0
        %440 = vmatprep.subr.mxu0 0.0
        %441 = vmatpush1.msra.mxu0 %v332
        %442 = vmatprep.subr.mxu0 0.0
        %443 = vmatpush1.msra.mxu0 %v333
        %444 = vmatprep.subr.mxu0 0.0
        %445 = vmatpush1.msra.mxu0 %v334
        %446 = vmatprep.subr.mxu0 0.0
        %447 = vmatpush1.msra.mxu0 %v335
        %448 = vmatprep.subr.mxu0 0.0
        %449 = vmatpush1.msra.mxu0 0.0
        %450 = vmatprep.subr.mxu0 0.0
        %451 = vmatpush1.msra.mxu0 0.0
        %452 = vmatprep.subr.mxu0 0.0
        %453 = vmatpush1.msra.mxu0 0.0
        %454 = vmatprep.subr.mxu0 0.0
        %455 = vmatpush1.msra.mxu0 0.0
        %456 = vmatprep.subr.mxu0 0.0
        %457 = vmatpush1.msra.mxu0 0.0
        %458 = vmatprep.subr.mxu0 0.0
        %459 = vmatpush1.msra.mxu0 0.0
        %460 = vmatprep.subr.mxu0 0.0
        %461 = vmatpush1.msra.mxu0 0.0
        %462 = vmatprep.subr.mxu0 0.0
        %463 = vmatpush1.msra.mxu0 0.0
        %464 = vmatprep.subr.mxu0 0.0
        %465 = vmatpush1.msra.mxu0 0.0
        %466 = vmatprep.subr.mxu0 0.0
        %467 = vmatpush1.msra.mxu0 0.0
        %468 = vmatprep.subr.mxu0 0.0
        %469 = vmatpush1.msra.mxu0 0.0
        %470 = vmatprep.subr.mxu0 0.0
        %471 = vmatpush1.msra.mxu0 0.0
        %472 = vmatprep.subr.mxu0 0.0
        %473 = vmatpush1.msra.mxu0 0.0
        %474 = vmatprep.subr.mxu0 0.0
        %475 = vmatpush1.msra.mxu0 0.0
        %476 = vmatprep.subr.mxu0 0.0
        %477 = vmatpush1.msra.mxu0 0.0
        %478 = vmatprep.subr.mxu0 0.0
        %479 = vmatpush1.msra.mxu0 0.0
        %480 = vmatprep.subr.mxu0 0.0
        %481 = vmatpush1.msra.mxu0 0.0
        %482 = vmatprep.subr.mxu0 0.0
        %483 = vmatpush1.msra.mxu0 0.0
        %484 = vmatprep.subr.mxu0 0.0
        %485 = vmatpush1.msra.mxu0 0.0
        %486 = vmatprep.subr.mxu0 0.0
        %487 = vmatpush1.msra.mxu0 0.0
        %488 = vmatprep.subr.mxu0 0.0
        %489 = vmatpush1.msra.mxu0 0.0
        %490 = vmatprep.subr.mxu0 0.0
        %491 = vmatpush1.msra.mxu0 0.0
        %492 = vmatprep.subr.mxu0 0.0
        %493 = vmatpush1.msra.mxu0 0.0
        %494 = vmatprep.subr.mxu0 0.0
        %495 = vmatpush1.msra.mxu0 0.0
        %496 = vmatprep.subr.mxu0 0.0
        %497 = vmatpush1.msra.mxu0 0.0
        %498 = vmatprep.subr.mxu0 0.0
        %499 = vmatpush1.msra.mxu0 0.0
        %500 = vmatprep.subr.mxu0 0.0
        %501 = vmatpush1.msra.mxu0 0.0
        %502 = vmatprep.subr.mxu0 0.0
        %503 = vmatpush1.msra.mxu0 0.0
        %504 = vmatprep.mubr.f32.mxu0 0.0
        %505 = vmatmul.mubr.f32.gmra.mrb[0].mxu0 %v345
        %v506 = vpop.f32.mrb[0].mxu0
        %v507 = vadd.f32 %v341, %v506
        %v508 = vpop.f32.mrb[0].mxu0
        %509 = vmatprep.mubr.f32.mxu0 0.0
        %510 = vmatmul.mubr.f32.gmra.mrb[0].mxu0 %v348
        %v511 = vpop.f32.mrb[0].mxu0
        %v512 = vadd.f32 %v341, %v511
        %v513 = vpop.f32.mrb[0].mxu0
        %514 = vmatprep.mubr.f32.mxu0 0.0
        %515 = vmatmul.mubr.f32.gmra.mrb[0].mxu0 %v351
        %v516 = vpop.f32.mrb[0].mxu0
        %v517 = vadd.f32 %v341, %v516
        %v518 = vpop.f32.mrb[0].mxu0
        %519 = vmatprep.mubr.f32.mxu0 0.0
        %520 = vmatmul.mubr.f32.gmra.mrb[0].mxu0 %v354
        %v521 = vpop.f32.mrb[0].mxu0
        %v522 = vadd.f32 %v341, %v521
        %v523 = vpop.f32.mrb[0].mxu0
        %524 = vmatprep.mubr.f32.mxu0 0.0
        %525 = vmatmul.mubr.f32.gmra.mrb[0].mxu0 %v357
        %v526 = vpop.f32.mrb[0].mxu0
        %v527 = vadd.f32 %v341, %v526
        %v528 = vpop.f32.mrb[0].mxu0
        %529 = vmatprep.mubr.f32.mxu0 0.0
        %530 = vmatmul.mubr.f32.gmra.mrb[0].mxu0 %v360
        %v531 = vpop.f32.mrb[0].mxu0
        %v532 = vadd.f32 %v341, %v531
        %v533 = vpop.f32.mrb[0].mxu0
        %534 = vmatprep.mubr.f32.mxu0 0.0
        %535 = vmatmul.mubr.f32.gmra.mrb[0].mxu0 %v363
        %v536 = vpop.f32.mrb[0].mxu0
        %v537 = vadd.f32 %v341, %v536
        %v538 = vpop.f32.mrb[0].mxu0
        %539 = vmatprep.mubr.f32.mxu0 0.0
        %540 = vmatmul.mubr.f32.gmra.mrb[0].mxu0 %v366
        %v541 = vpop.f32.mrb[0].mxu0
        %v542 = vadd.f32 %v341, %v541
        %v543 = vpop.f32.mrb[0].mxu0
        %544 = vmatprep.mubr.f32.mxu0 0.0
        %545 = vmatmul.mubr.f32.gmra.mrb[0].mxu0 %v369
        %v546 = vpop.f32.mrb[0].mxu0
        %v547 = vadd.f32 %v341, %v546
        %v548 = vpop.f32.mrb[0].mxu0
        %549 = vmatprep.mubr.f32.mxu0 0.0
        %550 = vmatmul.mubr.f32.gmra.mrb[0].mxu0 %v372
        %v551 = vpop.f32.mrb[0].mxu0
        %v552 = vadd.f32 %v341, %v551
        %v553 = vpop.f32.mrb[0].mxu0
        %554 = vmatprep.mubr.f32.mxu0 0.0
        %555 = vmatmul.mubr.f32.gmra.mrb[0].mxu0 %v375
        %v556 = vpop.f32.mrb[0].mxu0
        %v557 = vadd.f32 %v341, %v556
        %v558 = vpop.f32.mrb[0].mxu0
        %559 = vmatprep.mubr.f32.mxu0 0.0
        %560 = vmatmul.mubr.f32.gmra.mrb[0].mxu0 %v378
        %v561 = vpop.f32.mrb[0].mxu0
        %v562 = vadd.f32 %v341, %v561
        %v563 = vpop.f32.mrb[0].mxu0
        %564 = vmatprep.mubr.f32.mxu0 0.0
        %565 = vmatmul.mubr.f32.gmra.mrb[0].mxu0 %v381
        %v566 = vpop.f32.mrb[0].mxu0
        %v567 = vadd.f32 %v341, %v566
        %v568 = vpop.f32.mrb[0].mxu0
        %569 = vmatprep.mubr.f32.mxu0 0.0
        %570 = vmatmul.mubr.f32.gmra.mrb[0].mxu0 %v384
        %v571 = vpop.f32.mrb[0].mxu0
        %v572 = vadd.f32 %v341, %v571
        %v573 = vpop.f32.mrb[0].mxu0
        %574 = vmatprep.mubr.f32.mxu0 0.0
        %575 = vmatmul.mubr.f32.gmra.mrb[0].mxu0 %v387
        %v576 = vpop.f32.mrb[0].mxu0
        %v577 = vadd.f32 %v341, %v576
        %v578 = vpop.f32.mrb[0].mxu0
        %579 = vmatprep.mubr.f32.mxu0 0.0
        %580 = vmatmul.mubr.f32.gmra.mrb[0].mxu0 %v390
        %v581 = vpop.f32.mrb[0].mxu0
        %v582 = vadd.f32 %v341, %v581
        %v583 = vpop.f32.mrb[0].mxu0
        %584 = vmatprep.mubr.f32.mxu0 0.0
        %585 = vmatmul.mubr.f32.gmra.mrb[0].mxu0 %v393
        %v586 = vpop.f32.mrb[0].mxu0
        %v587 = vadd.f32 %v341, %v586
        %v588 = vpop.f32.mrb[0].mxu0
        %589 = vmatprep.mubr.f32.mxu0 0.0
        %590 = vmatmul.mubr.f32.gmra.mrb[0].mxu0 %v396
        %v591 = vpop.f32.mrb[0].mxu0
        %v592 = vadd.f32 %v341, %v591
        %v593 = vpop.f32.mrb[0].mxu0
        %594 = vmatprep.mubr.f32.mxu0 0.0
        %595 = vmatmul.mubr.f32.gmra.mrb[0].mxu0 %v399
        %v596 = vpop.f32.mrb[0].mxu0
        %v597 = vadd.f32 %v341, %v596
        %v598 = vpop.f32.mrb[0].mxu0
        %599 = vmatprep.mubr.f32.mxu0 0.0
        %600 = vmatmul.mubr.f32.gmra.mrb[0].mxu0 %v402
        %v601 = vpop.f32.mrb[0].mxu0
        %v602 = vadd.f32 %v341, %v601
        %v603 = vpop.f32.mrb[0].mxu0
        %604 = vmatprep.mubr.f32.mxu0 0.0
        %605 = vmatmul.mubr.f32.gmra.mrb[0].mxu0 %v405
        %v606 = vpop.f32.mrb[0].mxu0
        %v607 = vadd.f32 %v341, %v606
        %v608 = vpop.f32.mrb[0].mxu0
        %609 = vmatprep.mubr.f32.mxu0 0.0
        %610 = vmatmul.mubr.f32.gmra.mrb[0].mxu0 %v408
        %v611 = vpop.f32.mrb[0].mxu0
        %v612 = vadd.f32 %v341, %v611
        %v613 = vpop.f32.mrb[0].mxu0
        %614 = vmatprep.mubr.f32.mxu0 0.0
        %615 = vmatmul.mubr.f32.gmra.mrb[0].mxu0 %v411
        %v616 = vpop.f32.mrb[0].mxu0
        %v617 = vadd.f32 %v341, %v616
        %v618 = vpop.f32.mrb[0].mxu0
        %619 = vmatprep.mubr.f32.mxu0 0.0
        %620 = vmatmul.mubr.f32.gmra.mrb[0].mxu0 %v414
        %v621 = vpop.f32.mrb[0].mxu0
        %v622 = vadd.f32 %v341, %v621
        %v623 = vpop.f32.mrb[0].mxu0
        %624 = vmatprep.mubr.f32.mxu0 0.0
        %625 = vmatmul.mubr.f32.gmra.mrb[0].mxu0 %v417
        %v626 = vpop.f32.mrb[0].mxu0
        %v627 = vadd.f32 %v341, %v626
        %v628 = vpop.f32.mrb[0].mxu0
        %629 = vmatprep.mubr.f32.mxu0 0.0
        %630 = vmatmul.mubr.f32.gmra.mrb[0].mxu0 %v420
        %v631 = vpop.f32.mrb[0].mxu0
        %v632 = vadd.f32 %v341, %v631
        %v633 = vpop.f32.mrb[0].mxu0
        %634 = vmatprep.mubr.f32.mxu0 0.0
        %635 = vmatmul.mubr.f32.gmra.mrb[0].mxu0 %v423
        %v636 = vpop.f32.mrb[0].mxu0
        %v637 = vadd.f32 %v341, %v636
        %v638 = vpop.f32.mrb[0].mxu0
        %639 = vmatprep.mubr.f32.mxu0 0.0
        %640 = vmatmul.mubr.f32.gmra.mrb[0].mxu0 %v426
        %v641 = vpop.f32.mrb[0].mxu0
        %v642 = vadd.f32 %v341, %v641
        %v643 = vpop.f32.mrb[0].mxu0
        %644 = vmatprep.mubr.f32.mxu0 0.0
        %645 = vmatmul.mubr.f32.gmra.mrb[0].mxu0 %v429
        %v646 = vpop.f32.mrb[0].mxu0
        %v647 = vadd.f32 %v341, %v646
        %v648 = vpop.f32.mrb[0].mxu0
        %649 = vmatprep.mubr.f32.mxu0 0.0
        %650 = vmatmul.mubr.f32.gmra.mrb[0].mxu0 %v432
        %v651 = vpop.f32.mrb[0].mxu0
        %v652 = vadd.f32 %v341, %v651
        %v653 = vpop.f32.mrb[0].mxu0
        %654 = vmatprep.mubr.f32.mxu0 0.0
        %655 = vmatmul.mubr.f32.gmra.mrb[0].mxu0 %v435
        %v656 = vpop.f32.mrb[0].mxu0
        %v657 = vadd.f32 %v341, %v656
        %v658 = vpop.f32.mrb[0].mxu0
        %659 = vmatprep.mubr.f32.mxu0 0.0
        %660 = vmatmul.mubr.f32.gmra.mrb[0].mxu0 %v438
        %v661 = vpop.f32.mrb[0].mxu0
        %v662 = vadd.f32 %v341, %v661
        %v663 = vpop.f32.mrb[0].mxu0
        %664 = vdwg.mxu0
        %v665 = vmax.f32 %v507, 0.0
        %v666 = vmax.f32 %v512, 0.0
        %v667 = vmax.f32 %v517, 0.0
        %v668 = vmax.f32 %v522, 0.0
        %v669 = vmax.f32 %v527, 0.0
        %v670 = vmax.f32 %v532, 0.0
        %v671 = vmax.f32 %v537, 0.0
        %v672 = vmax.f32 %v542, 0.0
        %v673 = vmax.f32 %v547, 0.0
        %v674 = vmax.f32 %v552, 0.0
        %v675 = vmax.f32 %v557, 0.0
        %v676 = vmax.f32 %v562, 0.0
        %v677 = vmax.f32 %v567, 0.0
        %v678 = vmax.f32 %v572, 0.0
        %v679 = vmax.f32 %v577, 0.0
        %v680 = vmax.f32 %v582, 0.0
        %v681 = vmax.f32 %v587, 0.0
        %v682 = vmax.f32 %v592, 0.0
        %v683 = vmax.f32 %v597, 0.0
        %v684 = vmax.f32 %v602, 0.0
        %v685 = vmax.f32 %v607, 0.0
        %v686 = vmax.f32 %v612, 0.0
        %v687 = vmax.f32 %v617, 0.0
        %v688 = vmax.f32 %v622, 0.0
        %v689 = vmax.f32 %v627, 0.0
        %v690 = vmax.f32 %v632, 0.0
        %v691 = vmax.f32 %v637, 0.0
        %v692 = vmax.f32 %v642, 0.0
        %v693 = vmax.f32 %v647, 0.0
        %v694 = vmax.f32 %v652, 0.0
        %v695 = vmax.f32 %v657, 0.0
        %v696 = vmax.f32 %v662, 0.0
        %v697 = vld [vmem:[%s3] sm:$0xff]
        %v698 = vld [vmem:[%s3 + $0x8] sm:$0xff]
        %v699 = vld [vmem:[%s3 + $0x10] sm:$0xff]
        %v700 = vld [vmem:[%s3 + $0x18] sm:$0xff]
        %v701 = vld [vmem:[%s3 + $0x20] sm:$0xff]
        %v702 = vld [vmem:[%s3 + $0x28] sm:$0xff]
        %v703 = vld [vmem:[%s3 + $0x30] sm:$0xff]
        %v704 = vld [vmem:[%s3 + $0x38] sm:$0xff]
        %v705 = vld [vmem:[%s4] sm:$0x1]
        %v707 = vlaneseq
        %v708 = vshrl.u32 %v707, 7
        %v709 = vsub.s32 0, %v708
        %v710 = vrot.slane %v705, %v709
        %vm712 = vcmask 523264
        %v714 = vsel %vm712, %v665, 0
        %v717 = vsel %vm712, %v666, 0
        %v720 = vsel %vm712, %v667, 0
        %v723 = vsel %vm712, %v668, 0
        %v726 = vsel %vm712, %v669, 0
        %v729 = vsel %vm712, %v670, 0
        %v732 = vsel %vm712, %v671, 0
        %v735 = vsel %vm712, %v672, 0
        %v738 = vsel %vm712, %v673, 0
        %v741 = vsel %vm712, %v674, 0
        %v744 = vsel %vm712, %v675, 0
        %v747 = vsel %vm712, %v676, 0
        %v750 = vsel %vm712, %v677, 0
        %v753 = vsel %vm712, %v678, 0
        %v756 = vsel %vm712, %v679, 0
        %v759 = vsel %vm712, %v680, 0
        %v762 = vsel %vm712, %v681, 0
        %v765 = vsel %vm712, %v682, 0
        %v768 = vsel %vm712, %v683, 0
        %v771 = vsel %vm712, %v684, 0
        %v774 = vsel %vm712, %v685, 0
        %v777 = vsel %vm712, %v686, 0
        %v780 = vsel %vm712, %v687, 0
        %v783 = vsel %vm712, %v688, 0
        %v786 = vsel %vm712, %v689, 0
        %v789 = vsel %vm712, %v690, 0
        %v792 = vsel %vm712, %v691, 0
        %v795 = vsel %vm712, %v692, 0
        %v798 = vsel %vm712, %v693, 0
        %v801 = vsel %vm712, %v694, 0
        %v804 = vsel %vm712, %v695, 0
        %v807 = vsel %vm712, %v696, 0
        %809 = vmatprep.subr.mxu0 0.0
        %810 = vmatpush1.msra.mxu0 %v697
        %811 = vmatprep.subr.mxu0 0.0
        %812 = vmatpush1.msra.mxu0 %v698
        %813 = vmatprep.subr.mxu0 0.0
        %814 = vmatpush1.msra.mxu0 %v699
        %815 = vmatprep.subr.mxu0 0.0
        %816 = vmatpush1.msra.mxu0 %v700
        %817 = vmatprep.subr.mxu0 0.0
        %818 = vmatpush1.msra.mxu0 %v701
        %819 = vmatprep.subr.mxu0 0.0
        %820 = vmatpush1.msra.mxu0 %v702
        %821 = vmatprep.subr.mxu0 0.0
        %822 = vmatpush1.msra.mxu0 %v703
        %823 = vmatprep.subr.mxu0 0.0
        %824 = vmatpush1.msra.mxu0 %v704
        %825 = vmatprep.subr.mxu0 0.0
        %826 = vmatpush1.msra.mxu0 0.0
        %827 = vmatprep.subr.mxu0 0.0
        %828 = vmatpush1.msra.mxu0 0.0
        %829 = vmatprep.subr.mxu0 0.0
        %830 = vmatpush1.msra.mxu0 0.0
        %831 = vmatprep.subr.mxu0 0.0
        %832 = vmatpush1.msra.mxu0 0.0
        %833 = vmatprep.subr.mxu0 0.0
        %834 = vmatpush1.msra.mxu0 0.0
        %835 = vmatprep.subr.mxu0 0.0
        %836 = vmatpush1.msra.mxu0 0.0
        %837 = vmatprep.subr.mxu0 0.0
        %838 = vmatpush1.msra.mxu0 0.0
        %839 = vmatprep.subr.mxu0 0.0
        %840 = vmatpush1.msra.mxu0 0.0
        %841 = vmatprep.subr.mxu0 0.0
        %842 = vmatpush1.msra.mxu0 0.0
        %843 = vmatprep.subr.mxu0 0.0
        %844 = vmatpush1.msra.mxu0 0.0
        %845 = vmatprep.subr.mxu0 0.0
        %846 = vmatpush1.msra.mxu0 0.0
        %847 = vmatprep.subr.mxu0 0.0
        %848 = vmatpush1.msra.mxu0 0.0
        %849 = vmatprep.subr.mxu0 0.0
        %850 = vmatpush1.msra.mxu0 0.0
        %851 = vmatprep.subr.mxu0 0.0
        %852 = vmatpush1.msra.mxu0 0.0
        %853 = vmatprep.subr.mxu0 0.0
        %854 = vmatpush1.msra.mxu0 0.0
        %855 = vmatprep.subr.mxu0 0.0
        %856 = vmatpush1.msra.mxu0 0.0
        %857 = vmatprep.subr.mxu0 0.0
        %858 = vmatpush1.msra.mxu0 0.0
        %859 = vmatprep.subr.mxu0 0.0
        %860 = vmatpush1.msra.mxu0 0.0
        %861 = vmatprep.subr.mxu0 0.0
        %862 = vmatpush1.msra.mxu0 0.0
        %863 = vmatprep.subr.mxu0 0.0
        %864 = vmatpush1.msra.mxu0 0.0
        %865 = vmatprep.subr.mxu0 0.0
        %866 = vmatpush1.msra.mxu0 0.0
        %867 = vmatprep.subr.mxu0 0.0
        %868 = vmatpush1.msra.mxu0 0.0
        %869 = vmatprep.subr.mxu0 0.0
        %870 = vmatpush1.msra.mxu0 0.0
        %871 = vmatprep.subr.mxu0 0.0
        %872 = vmatpush1.msra.mxu0 0.0
        %873 = vmatprep.mubr.f32.mxu0 0.0
        %874 = vmatmul.mubr.f32.gmra.mrb[0].mxu0 %v714
        %v875 = vpop.f32.mrb[0].mxu0
        %v876 = vadd.f32 %v710, %v875
        %v877 = vpop.f32.mrb[0].mxu0
        %878 = vmatprep.mubr.f32.mxu0 0.0
        %879 = vmatmul.mubr.f32.gmra.mrb[0].mxu0 %v717
        %v880 = vpop.f32.mrb[0].mxu0
        %v881 = vadd.f32 %v710, %v880
        %v882 = vpop.f32.mrb[0].mxu0
        %883 = vmatprep.mubr.f32.mxu0 0.0
        %884 = vmatmul.mubr.f32.gmra.mrb[0].mxu0 %v720
        %v885 = vpop.f32.mrb[0].mxu0
        %v886 = vadd.f32 %v710, %v885
        %v887 = vpop.f32.mrb[0].mxu0
        %888 = vmatprep.mubr.f32.mxu0 0.0
        %889 = vmatmul.mubr.f32.gmra.mrb[0].mxu0 %v723
        %v890 = vpop.f32.mrb[0].mxu0
        %v891 = vadd.f32 %v710, %v890
        %v892 = vpop.f32.mrb[0].mxu0
        %893 = vmatprep.mubr.f32.mxu0 0.0
        %894 = vmatmul.mubr.f32.gmra.mrb[0].mxu0 %v726
        %v895 = vpop.f32.mrb[0].mxu0
        %v896 = vadd.f32 %v710, %v895
        %v897 = vpop.f32.mrb[0].mxu0
        %898 = vmatprep.mubr.f32.mxu0 0.0
        %899 = vmatmul.mubr.f32.gmra.mrb[0].mxu0 %v729
        %v900 = vpop.f32.mrb[0].mxu0
        %v901 = vadd.f32 %v710, %v900
        %v902 = vpop.f32.mrb[0].mxu0
        %903 = vmatprep.mubr.f32.mxu0 0.0
        %904 = vmatmul.mubr.f32.gmra.mrb[0].mxu0 %v732
        %v905 = vpop.f32.mrb[0].mxu0
        %v906 = vadd.f32 %v710, %v905
        %v907 = vpop.f32.mrb[0].mxu0
        %908 = vmatprep.mubr.f32.mxu0 0.0
        %909 = vmatmul.mubr.f32.gmra.mrb[0].mxu0 %v735
        %v910 = vpop.f32.mrb[0].mxu0
        %v911 = vadd.f32 %v710, %v910
        %v912 = vpop.f32.mrb[0].mxu0
        %913 = vmatprep.mubr.f32.mxu0 0.0
        %914 = vmatmul.mubr.f32.gmra.mrb[0].mxu0 %v738
        %v915 = vpop.f32.mrb[0].mxu0
        %v916 = vadd.f32 %v710, %v915
        %v917 = vpop.f32.mrb[0].mxu0
        %918 = vmatprep.mubr.f32.mxu0 0.0
        %919 = vmatmul.mubr.f32.gmra.mrb[0].mxu0 %v741
        %v920 = vpop.f32.mrb[0].mxu0
        %v921 = vadd.f32 %v710, %v920
        %v922 = vpop.f32.mrb[0].mxu0
        %923 = vmatprep.mubr.f32.mxu0 0.0
        %924 = vmatmul.mubr.f32.gmra.mrb[0].mxu0 %v744
        %v925 = vpop.f32.mrb[0].mxu0
        %v926 = vadd.f32 %v710, %v925
        %v927 = vpop.f32.mrb[0].mxu0
        %928 = vmatprep.mubr.f32.mxu0 0.0
        %929 = vmatmul.mubr.f32.gmra.mrb[0].mxu0 %v747
        %v930 = vpop.f32.mrb[0].mxu0
        %v931 = vadd.f32 %v710, %v930
        %v932 = vpop.f32.mrb[0].mxu0
        %933 = vmatprep.mubr.f32.mxu0 0.0
        %934 = vmatmul.mubr.f32.gmra.mrb[0].mxu0 %v750
        %v935 = vpop.f32.mrb[0].mxu0
        %v936 = vadd.f32 %v710, %v935
        %v937 = vpop.f32.mrb[0].mxu0
        %938 = vmatprep.mubr.f32.mxu0 0.0
        %939 = vmatmul.mubr.f32.gmra.mrb[0].mxu0 %v753
        %v940 = vpop.f32.mrb[0].mxu0
        %v941 = vadd.f32 %v710, %v940
        %v942 = vpop.f32.mrb[0].mxu0
        %943 = vmatprep.mubr.f32.mxu0 0.0
        %944 = vmatmul.mubr.f32.gmra.mrb[0].mxu0 %v756
        %v945 = vpop.f32.mrb[0].mxu0
        %v946 = vadd.f32 %v710, %v945
        %v947 = vpop.f32.mrb[0].mxu0
        %948 = vmatprep.mubr.f32.mxu0 0.0
        %949 = vmatmul.mubr.f32.gmra.mrb[0].mxu0 %v759
        %v950 = vpop.f32.mrb[0].mxu0
        %v951 = vadd.f32 %v710, %v950
        %v952 = vpop.f32.mrb[0].mxu0
        %953 = vmatprep.mubr.f32.mxu0 0.0
        %954 = vmatmul.mubr.f32.gmra.mrb[0].mxu0 %v762
        %v955 = vpop.f32.mrb[0].mxu0
        %v956 = vadd.f32 %v710, %v955
        %v957 = vpop.f32.mrb[0].mxu0
        %958 = vmatprep.mubr.f32.mxu0 0.0
        %959 = vmatmul.mubr.f32.gmra.mrb[0].mxu0 %v765
        %v960 = vpop.f32.mrb[0].mxu0
        %v961 = vadd.f32 %v710, %v960
        %v962 = vpop.f32.mrb[0].mxu0
        %963 = vmatprep.mubr.f32.mxu0 0.0
        %964 = vmatmul.mubr.f32.gmra.mrb[0].mxu0 %v768
        %v965 = vpop.f32.mrb[0].mxu0
        %v966 = vadd.f32 %v710, %v965
        %v967 = vpop.f32.mrb[0].mxu0
        %968 = vmatprep.mubr.f32.mxu0 0.0
        %969 = vmatmul.mubr.f32.gmra.mrb[0].mxu0 %v771
        %v970 = vpop.f32.mrb[0].mxu0
        %v971 = vadd.f32 %v710, %v970
        %v972 = vpop.f32.mrb[0].mxu0
        %973 = vmatprep.mubr.f32.mxu0 0.0
        %974 = vmatmul.mubr.f32.gmra.mrb[0].mxu0 %v774
        %v975 = vpop.f32.mrb[0].mxu0
        %v976 = vadd.f32 %v710, %v975
        %v977 = vpop.f32.mrb[0].mxu0
        %978 = vmatprep.mubr.f32.mxu0 0.0
        %979 = vmatmul.mubr.f32.gmra.mrb[0].mxu0 %v777
        %v980 = vpop.f32.mrb[0].mxu0
        %v981 = vadd.f32 %v710, %v980
        %v982 = vpop.f32.mrb[0].mxu0
        %983 = vmatprep.mubr.f32.mxu0 0.0
        %984 = vmatmul.mubr.f32.gmra.mrb[0].mxu0 %v780
        %v985 = vpop.f32.mrb[0].mxu0
        %v986 = vadd.f32 %v710, %v985
        %v987 = vpop.f32.mrb[0].mxu0
        %988 = vmatprep.mubr.f32.mxu0 0.0
        %989 = vmatmul.mubr.f32.gmra.mrb[0].mxu0 %v783
        %v990 = vpop.f32.mrb[0].mxu0
        %v991 = vadd.f32 %v710, %v990
        %v992 = vpop.f32.mrb[0].mxu0
        %993 = vmatprep.mubr.f32.mxu0 0.0
        %994 = vmatmul.mubr.f32.gmra.mrb[0].mxu0 %v786
        %v995 = vpop.f32.mrb[0].mxu0
        %v996 = vadd.f32 %v710, %v995
        %v997 = vpop.f32.mrb[0].mxu0
        %998 = vmatprep.mubr.f32.mxu0 0.0
        %999 = vmatmul.mubr.f32.gmra.mrb[0].mxu0 %v789
        %v1000 = vpop.f32.mrb[0].mxu0
        %v1001 = vadd.f32 %v710, %v1000
        %v1002 = vpop.f32.mrb[0].mxu0
        %1003 = vmatprep.mubr.f32.mxu0 0.0
        %1004 = vmatmul.mubr.f32.gmra.mrb[0].mxu0 %v792
        %v1005 = vpop.f32.mrb[0].mxu0
        %v1006 = vadd.f32 %v710, %v1005
        %v1007 = vpop.f32.mrb[0].mxu0
        %1008 = vmatprep.mubr.f32.mxu0 0.0
        %1009 = vmatmul.mubr.f32.gmra.mrb[0].mxu0 %v795
        %v1010 = vpop.f32.mrb[0].mxu0
        %v1011 = vadd.f32 %v710, %v1010
        %v1012 = vpop.f32.mrb[0].mxu0
        %1013 = vmatprep.mubr.f32.mxu0 0.0
        %1014 = vmatmul.mubr.f32.gmra.mrb[0].mxu0 %v798
        %v1015 = vpop.f32.mrb[0].mxu0
        %v1016 = vadd.f32 %v710, %v1015
        %v1017 = vpop.f32.mrb[0].mxu0
        %1018 = vmatprep.mubr.f32.mxu0 0.0
        %1019 = vmatmul.mubr.f32.gmra.mrb[0].mxu0 %v801
        %v1020 = vpop.f32.mrb[0].mxu0
        %v1021 = vadd.f32 %v710, %v1020
        %v1022 = vpop.f32.mrb[0].mxu0
        %1023 = vmatprep.mubr.f32.mxu0 0.0
        %1024 = vmatmul.mubr.f32.gmra.mrb[0].mxu0 %v804
        %v1025 = vpop.f32.mrb[0].mxu0
        %v1026 = vadd.f32 %v710, %v1025
        %v1027 = vpop.f32.mrb[0].mxu0
        %1028 = vmatprep.mubr.f32.mxu0 0.0
        %1029 = vmatmul.mubr.f32.gmra.mrb[0].mxu0 %v807
        %v1030 = vpop.f32.mrb[0].mxu0
        %v1031 = vadd.f32 %v710, %v1030
        %v1032 = vpop.f32.mrb[0].mxu0
        %1033 = vdwg.mxu0
        %v1034 = vmax.f32 %v876, 0.0
        %v1035 = vmax.f32 %v881, 0.0
        %v1036 = vmax.f32 %v886, 0.0
        %v1037 = vmax.f32 %v891, 0.0
        %v1038 = vmax.f32 %v896, 0.0
        %v1039 = vmax.f32 %v901, 0.0
        %v1040 = vmax.f32 %v906, 0.0
        %v1041 = vmax.f32 %v911, 0.0
        %v1042 = vmax.f32 %v916, 0.0
        %v1043 = vmax.f32 %v921, 0.0
        %v1044 = vmax.f32 %v926, 0.0
        %v1045 = vmax.f32 %v931, 0.0
        %v1046 = vmax.f32 %v936, 0.0
        %v1047 = vmax.f32 %v941, 0.0
        %v1048 = vmax.f32 %v946, 0.0
        %v1049 = vmax.f32 %v951, 0.0
        %v1050 = vmax.f32 %v956, 0.0
        %v1051 = vmax.f32 %v961, 0.0
        %v1052 = vmax.f32 %v966, 0.0
        %v1053 = vmax.f32 %v971, 0.0
        %v1054 = vmax.f32 %v976, 0.0
        %v1055 = vmax.f32 %v981, 0.0
        %v1056 = vmax.f32 %v986, 0.0
        %v1057 = vmax.f32 %v991, 0.0
        %v1058 = vmax.f32 %v996, 0.0
        %v1059 = vmax.f32 %v1001, 0.0
        %v1060 = vmax.f32 %v1006, 0.0
        %v1061 = vmax.f32 %v1011, 0.0
        %v1062 = vmax.f32 %v1016, 0.0
        %v1063 = vmax.f32 %v1021, 0.0
        %v1064 = vmax.f32 %v1026, 0.0
        %v1065 = vmax.f32 %v1031, 0.0
        %v1066 = vld [vmem:[%s5] sm:$0x1]
        %v1068 = vlaneseq
        %v1069 = vshrl.u32 %v1068, 7
        %v1070 = vsub.s32 0, %v1069
        %v1071 = vrot.slane %v1066, %v1070
        %v1073 = vmul.f32 %v1034, %v1071
        %v1074 = vmul.f32 %v1035, %v1071
        %v1075 = vmul.f32 %v1036, %v1071
        %v1076 = vmul.f32 %v1037, %v1071
        %v1077 = vmul.f32 %v1038, %v1071
        %v1078 = vmul.f32 %v1039, %v1071
        %v1079 = vmul.f32 %v1040, %v1071
        %v1080 = vmul.f32 %v1041, %v1071
        %v1081 = vmul.f32 %v1042, %v1071
        %v1082 = vmul.f32 %v1043, %v1071
        %v1083 = vmul.f32 %v1044, %v1071
        %v1084 = vmul.f32 %v1045, %v1071
        %v1085 = vmul.f32 %v1046, %v1071
        %v1086 = vmul.f32 %v1047, %v1071
        %v1087 = vmul.f32 %v1048, %v1071
        %v1088 = vmul.f32 %v1049, %v1071
        %v1089 = vmul.f32 %v1050, %v1071
        %v1090 = vmul.f32 %v1051, %v1071
        %v1091 = vmul.f32 %v1052, %v1071
        %v1092 = vmul.f32 %v1053, %v1071
        %v1093 = vmul.f32 %v1054, %v1071
        %v1094 = vmul.f32 %v1055, %v1071
        %v1095 = vmul.f32 %v1056, %v1071
        %v1096 = vmul.f32 %v1057, %v1071
        %v1097 = vmul.f32 %v1058, %v1071
        %v1098 = vmul.f32 %v1059, %v1071
        %v1099 = vmul.f32 %v1060, %v1071
        %v1100 = vmul.f32 %v1061, %v1071
        %v1101 = vmul.f32 %v1062, %v1071
        %v1102 = vmul.f32 %v1063, %v1071
        %v1103 = vmul.f32 %v1064, %v1071
        %v1104 = vmul.f32 %v1065, %v1071
        %v1105 = vsel %vm343, %v1073, 0.0
        %1106 = vadd.xlane.f32.xlu0 %v1105
        %v1107 = vpop.xlane.xlu0 %1106
        %v1108 = vsel %vm343, %v1074, 0.0
        %1109 = vadd.xlane.f32.xlu0 %v1108
        %v1110 = vpop.xlane.xlu0 %1109
        %v1111 = vsel %vm343, %v1075, 0.0
        %1112 = vadd.xlane.f32.xlu0 %v1111
        %v1113 = vpop.xlane.xlu0 %1112
        %v1114 = vsel %vm343, %v1076, 0.0
        %1115 = vadd.xlane.f32.xlu0 %v1114
        %v1116 = vpop.xlane.xlu0 %1115
        %v1117 = vsel %vm343, %v1077, 0.0
        %1118 = vadd.xlane.f32.xlu0 %v1117
        %v1119 = vpop.xlane.xlu0 %1118
        %v1120 = vsel %vm343, %v1078, 0.0
        %1121 = vadd.xlane.f32.xlu0 %v1120
        %v1122 = vpop.xlane.xlu0 %1121
        %v1123 = vsel %vm343, %v1079, 0.0
        %1124 = vadd.xlane.f32.xlu0 %v1123
        %v1125 = vpop.xlane.xlu0 %1124
        %v1126 = vsel %vm343, %v1080, 0.0
        %1127 = vadd.xlane.f32.xlu0 %v1126
        %v1128 = vpop.xlane.xlu0 %1127
        %v1129 = vsel %vm343, %v1081, 0.0
        %1130 = vadd.xlane.f32.xlu0 %v1129
        %v1131 = vpop.xlane.xlu0 %1130
        %v1132 = vsel %vm343, %v1082, 0.0
        %1133 = vadd.xlane.f32.xlu0 %v1132
        %v1134 = vpop.xlane.xlu0 %1133
        %v1135 = vsel %vm343, %v1083, 0.0
        %1136 = vadd.xlane.f32.xlu0 %v1135
        %v1137 = vpop.xlane.xlu0 %1136
        %v1138 = vsel %vm343, %v1084, 0.0
        %1139 = vadd.xlane.f32.xlu0 %v1138
        %v1140 = vpop.xlane.xlu0 %1139
        %v1141 = vsel %vm343, %v1085, 0.0
        %1142 = vadd.xlane.f32.xlu0 %v1141
        %v1143 = vpop.xlane.xlu0 %1142
        %v1144 = vsel %vm343, %v1086, 0.0
        %1145 = vadd.xlane.f32.xlu0 %v1144
        %v1146 = vpop.xlane.xlu0 %1145
        %v1147 = vsel %vm343, %v1087, 0.0
        %1148 = vadd.xlane.f32.xlu0 %v1147
        %v1149 = vpop.xlane.xlu0 %1148
        %v1150 = vsel %vm343, %v1088, 0.0
        %1151 = vadd.xlane.f32.xlu0 %v1150
        %v1152 = vpop.xlane.xlu0 %1151
        %v1153 = vsel %vm343, %v1089, 0.0
        %1154 = vadd.xlane.f32.xlu0 %v1153
        %v1155 = vpop.xlane.xlu0 %1154
        %v1156 = vsel %vm343, %v1090, 0.0
        %1157 = vadd.xlane.f32.xlu0 %v1156
        %v1158 = vpop.xlane.xlu0 %1157
        %v1159 = vsel %vm343, %v1091, 0.0
        %1160 = vadd.xlane.f32.xlu0 %v1159
        %v1161 = vpop.xlane.xlu0 %1160
        %v1162 = vsel %vm343, %v1092, 0.0
        %1163 = vadd.xlane.f32.xlu0 %v1162
        %v1164 = vpop.xlane.xlu0 %1163
        %v1165 = vsel %vm343, %v1093, 0.0
        %1166 = vadd.xlane.f32.xlu0 %v1165
        %v1167 = vpop.xlane.xlu0 %1166
        %v1168 = vsel %vm343, %v1094, 0.0
        %1169 = vadd.xlane.f32.xlu0 %v1168
        %v1170 = vpop.xlane.xlu0 %1169
        %v1171 = vsel %vm343, %v1095, 0.0
        %1172 = vadd.xlane.f32.xlu0 %v1171
        %v1173 = vpop.xlane.xlu0 %1172
        %v1174 = vsel %vm343, %v1096, 0.0
        %1175 = vadd.xlane.f32.xlu0 %v1174
        %v1176 = vpop.xlane.xlu0 %1175
        %v1177 = vsel %vm343, %v1097, 0.0
        %1178 = vadd.xlane.f32.xlu0 %v1177
        %v1179 = vpop.xlane.xlu0 %1178
        %v1180 = vsel %vm343, %v1098, 0.0
        %1181 = vadd.xlane.f32.xlu0 %v1180
        %v1182 = vpop.xlane.xlu0 %1181
        %v1183 = vsel %vm343, %v1099, 0.0
        %1184 = vadd.xlane.f32.xlu0 %v1183
        %v1185 = vpop.xlane.xlu0 %1184
        %v1186 = vsel %vm343, %v1100, 0.0
        %1187 = vadd.xlane.f32.xlu0 %v1186
        %v1188 = vpop.xlane.xlu0 %1187
        %v1189 = vsel %vm343, %v1101, 0.0
        %1190 = vadd.xlane.f32.xlu0 %v1189
        %v1191 = vpop.xlane.xlu0 %1190
        %v1192 = vsel %vm343, %v1102, 0.0
        %1193 = vadd.xlane.f32.xlu0 %v1192
        %v1194 = vpop.xlane.xlu0 %1193
        %v1195 = vsel %vm343, %v1103, 0.0
        %1196 = vadd.xlane.f32.xlu0 %v1195
        %v1197 = vpop.xlane.xlu0 %1196
        %v1198 = vsel %vm343, %v1104, 0.0
        %1199 = vadd.xlane.f32.xlu0 %v1198
        %v1200 = vpop.xlane.xlu0 %1199
        %s1201 = sld [smem:[#allocation2]]
        %v1202 = vstv %s1201
        %v1203 = vadd.f32 %v1107, %v1202
        %v1204 = vadd.f32 %v1110, %v1202
        %v1205 = vadd.f32 %v1113, %v1202
        %v1206 = vadd.f32 %v1116, %v1202
        %v1207 = vadd.f32 %v1119, %v1202
        %v1208 = vadd.f32 %v1122, %v1202
        %v1209 = vadd.f32 %v1125, %v1202
        %v1210 = vadd.f32 %v1128, %v1202
        %v1211 = vadd.f32 %v1131, %v1202
        %v1212 = vadd.f32 %v1134, %v1202
        %v1213 = vadd.f32 %v1137, %v1202
        %v1214 = vadd.f32 %v1140, %v1202
        %v1215 = vadd.f32 %v1143, %v1202
        %v1216 = vadd.f32 %v1146, %v1202
        %v1217 = vadd.f32 %v1149, %v1202
        %v1218 = vadd.f32 %v1152, %v1202
        %v1219 = vadd.f32 %v1155, %v1202
        %v1220 = vadd.f32 %v1158, %v1202
        %v1221 = vadd.f32 %v1161, %v1202
        %v1222 = vadd.f32 %v1164, %v1202
        %v1223 = vadd.f32 %v1167, %v1202
        %v1224 = vadd.f32 %v1170, %v1202
        %v1225 = vadd.f32 %v1173, %v1202
        %v1226 = vadd.f32 %v1176, %v1202
        %v1227 = vadd.f32 %v1179, %v1202
        %v1228 = vadd.f32 %v1182, %v1202
        %v1229 = vadd.f32 %v1185, %v1202
        %v1230 = vadd.f32 %v1188, %v1202
        %v1231 = vadd.f32 %v1191, %v1202
        %v1232 = vadd.f32 %v1194, %v1202
        %v1233 = vadd.f32 %v1197, %v1202
        %v1234 = vadd.f32 %v1200, %v1202
        %v1235 = vxor.u32 %v1203, 2147483648
        %v1236 = vxor.u32 %v1204, 2147483648
        %v1237 = vxor.u32 %v1205, 2147483648
        %v1238 = vxor.u32 %v1206, 2147483648
        %v1239 = vxor.u32 %v1207, 2147483648
        %v1240 = vxor.u32 %v1208, 2147483648
        %v1241 = vxor.u32 %v1209, 2147483648
        %v1242 = vxor.u32 %v1210, 2147483648
        %v1243 = vxor.u32 %v1211, 2147483648
        %v1244 = vxor.u32 %v1212, 2147483648
        %v1245 = vxor.u32 %v1213, 2147483648
        %v1246 = vxor.u32 %v1214, 2147483648
        %v1247 = vxor.u32 %v1215, 2147483648
        %v1248 = vxor.u32 %v1216, 2147483648
        %v1249 = vxor.u32 %v1217, 2147483648
        %v1250 = vxor.u32 %v1218, 2147483648
        %v1251 = vxor.u32 %v1219, 2147483648
        %v1252 = vxor.u32 %v1220, 2147483648
        %v1253 = vxor.u32 %v1221, 2147483648
        %v1254 = vxor.u32 %v1222, 2147483648
        %v1255 = vxor.u32 %v1223, 2147483648
        %v1256 = vxor.u32 %v1224, 2147483648
        %v1257 = vxor.u32 %v1225, 2147483648
        %v1258 = vxor.u32 %v1226, 2147483648
        %v1259 = vxor.u32 %v1227, 2147483648
        %v1260 = vxor.u32 %v1228, 2147483648
        %v1261 = vxor.u32 %v1229, 2147483648
        %v1262 = vxor.u32 %v1230, 2147483648
        %v1263 = vxor.u32 %v1231, 2147483648
        %v1264 = vxor.u32 %v1232, 2147483648
        %v1265 = vxor.u32 %v1233, 2147483648
        %v1266 = vxor.u32 %v1234, 2147483648
        %v1267 = vmul.f32 %v1235, 1.442695
        %v1268 = vpow.pop %v1267
        %v1269 = vmul.f32 %v1236, 1.442695
        %v1270 = vpow.pop %v1269
        %v1271 = vmul.f32 %v1237, 1.442695
        %v1272 = vpow.pop %v1271
        %v1273 = vmul.f32 %v1238, 1.442695
        %v1274 = vpow.pop %v1273
        %v1275 = vmul.f32 %v1239, 1.442695
        %v1276 = vpow.pop %v1275
        %v1277 = vmul.f32 %v1240, 1.442695
        %v1278 = vpow.pop %v1277
        %v1279 = vmul.f32 %v1241, 1.442695
        %v1280 = vpow.pop %v1279
        %v1281 = vmul.f32 %v1242, 1.442695
        %v1282 = vpow.pop %v1281
        %v1283 = vmul.f32 %v1243, 1.442695
        %v1284 = vpow.pop %v1283
        %v1285 = vmul.f32 %v1244, 1.442695
        %v1286 = vpow.pop %v1285
        %v1287 = vmul.f32 %v1245, 1.442695
        %v1288 = vpow.pop %v1287
        %v1289 = vmul.f32 %v1246, 1.442695
        %v1290 = vpow.pop %v1289
        %v1291 = vmul.f32 %v1247, 1.442695
        %v1292 = vpow.pop %v1291
        %v1293 = vmul.f32 %v1248, 1.442695
        %v1294 = vpow.pop %v1293
        %v1295 = vmul.f32 %v1249, 1.442695
        %v1296 = vpow.pop %v1295
        %v1297 = vmul.f32 %v1250, 1.442695
        %v1298 = vpow.pop %v1297
        %v1299 = vmul.f32 %v1251, 1.442695
        %v1300 = vpow.pop %v1299
        %v1301 = vmul.f32 %v1252, 1.442695
        %v1302 = vpow.pop %v1301
        %v1303 = vmul.f32 %v1253, 1.442695
        %v1304 = vpow.pop %v1303
        %v1305 = vmul.f32 %v1254, 1.442695
        %v1306 = vpow.pop %v1305
        %v1307 = vmul.f32 %v1255, 1.442695
        %v1308 = vpow.pop %v1307
        %v1309 = vmul.f32 %v1256, 1.442695
        %v1310 = vpow.pop %v1309
        %v1311 = vmul.f32 %v1257, 1.442695
        %v1312 = vpow.pop %v1311
        %v1313 = vmul.f32 %v1258, 1.442695
        %v1314 = vpow.pop %v1313
        %v1315 = vmul.f32 %v1259, 1.442695
        %v1316 = vpow.pop %v1315
        %v1317 = vmul.f32 %v1260, 1.442695
        %v1318 = vpow.pop %v1317
        %v1319 = vmul.f32 %v1261, 1.442695
        %v1320 = vpow.pop %v1319
        %v1321 = vmul.f32 %v1262, 1.442695
        %v1322 = vpow.pop %v1321
        %v1323 = vmul.f32 %v1263, 1.442695
        %v1324 = vpow.pop %v1323
        %v1325 = vmul.f32 %v1264, 1.442695
        %v1326 = vpow.pop %v1325
        %v1327 = vmul.f32 %v1265, 1.442695
        %v1328 = vpow.pop %v1327
        %v1329 = vmul.f32 %v1266, 1.442695
        %v1330 = vpow.pop %v1329
        %v1331 = vadd.f32 %v1268, 1.0
        %v1332 = vadd.f32 %v1270, 1.0
        %v1333 = vadd.f32 %v1272, 1.0
        %v1334 = vadd.f32 %v1274, 1.0
        %v1335 = vadd.f32 %v1276, 1.0
        %v1336 = vadd.f32 %v1278, 1.0
        %v1337 = vadd.f32 %v1280, 1.0
        %v1338 = vadd.f32 %v1282, 1.0
        %v1339 = vadd.f32 %v1284, 1.0
        %v1340 = vadd.f32 %v1286, 1.0
        %v1341 = vadd.f32 %v1288, 1.0
        %v1342 = vadd.f32 %v1290, 1.0
        %v1343 = vadd.f32 %v1292, 1.0
        %v1344 = vadd.f32 %v1294, 1.0
        %v1345 = vadd.f32 %v1296, 1.0
        %v1346 = vadd.f32 %v1298, 1.0
        %v1347 = vadd.f32 %v1300, 1.0
        %v1348 = vadd.f32 %v1302, 1.0
        %v1349 = vadd.f32 %v1304, 1.0
        %v1350 = vadd.f32 %v1306, 1.0
        %v1351 = vadd.f32 %v1308, 1.0
        %v1352 = vadd.f32 %v1310, 1.0
        %v1353 = vadd.f32 %v1312, 1.0
        %v1354 = vadd.f32 %v1314, 1.0
        %v1355 = vadd.f32 %v1316, 1.0
        %v1356 = vadd.f32 %v1318, 1.0
        %v1357 = vadd.f32 %v1320, 1.0
        %v1358 = vadd.f32 %v1322, 1.0
        %v1359 = vadd.f32 %v1324, 1.0
        %v1360 = vadd.f32 %v1326, 1.0
        %v1361 = vadd.f32 %v1328, 1.0
        %v1362 = vadd.f32 %v1330, 1.0
        %v1363 = vrcp.pop %v1331
        %v1364 = vmul.f32 1.0, %v1363
        %v1365 = vrcp.pop %v1332
        %v1366 = vmul.f32 1.0, %v1365
        %v1367 = vrcp.pop %v1333
        %v1368 = vmul.f32 1.0, %v1367
        %v1369 = vrcp.pop %v1334
        %v1370 = vmul.f32 1.0, %v1369
        %v1371 = vrcp.pop %v1335
        %v1372 = vmul.f32 1.0, %v1371
        %v1373 = vrcp.pop %v1336
        %v1374 = vmul.f32 1.0, %v1373
        %v1375 = vrcp.pop %v1337
        %v1376 = vmul.f32 1.0, %v1375
        %v1377 = vrcp.pop %v1338
        %v1378 = vmul.f32 1.0, %v1377
        %v1379 = vrcp.pop %v1339
        %v1380 = vmul.f32 1.0, %v1379
        %v1381 = vrcp.pop %v1340
        %v1382 = vmul.f32 1.0, %v1381
        %v1383 = vrcp.pop %v1341
        %v1384 = vmul.f32 1.0, %v1383
        %v1385 = vrcp.pop %v1342
        %v1386 = vmul.f32 1.0, %v1385
        %v1387 = vrcp.pop %v1343
        %v1388 = vmul.f32 1.0, %v1387
        %v1389 = vrcp.pop %v1344
        %v1390 = vmul.f32 1.0, %v1389
        %v1391 = vrcp.pop %v1345
        %v1392 = vmul.f32 1.0, %v1391
        %v1393 = vrcp.pop %v1346
        %v1394 = vmul.f32 1.0, %v1393
        %v1395 = vrcp.pop %v1347
        %v1396 = vmul.f32 1.0, %v1395
        %v1397 = vrcp.pop %v1348
        %v1398 = vmul.f32 1.0, %v1397
        %v1399 = vrcp.pop %v1349
        %v1400 = vmul.f32 1.0, %v1399
        %v1401 = vrcp.pop %v1350
        %v1402 = vmul.f32 1.0, %v1401
        %v1403 = vrcp.pop %v1351
        %v1404 = vmul.f32 1.0, %v1403
        %v1405 = vrcp.pop %v1352
        %v1406 = vmul.f32 1.0, %v1405
        %v1407 = vrcp.pop %v1353
        %v1408 = vmul.f32 1.0, %v1407
        %v1409 = vrcp.pop %v1354
        %v1410 = vmul.f32 1.0, %v1409
        %v1411 = vrcp.pop %v1355
        %v1412 = vmul.f32 1.0, %v1411
        %v1413 = vrcp.pop %v1356
        %v1414 = vmul.f32 1.0, %v1413
        %v1415 = vrcp.pop %v1357
        %v1416 = vmul.f32 1.0, %v1415
        %v1417 = vrcp.pop %v1358
        %v1418 = vmul.f32 1.0, %v1417
        %v1419 = vrcp.pop %v1359
        %v1420 = vmul.f32 1.0, %v1419
        %v1421 = vrcp.pop %v1360
        %v1422 = vmul.f32 1.0, %v1421
        %v1423 = vrcp.pop %v1361
        %v1424 = vmul.f32 1.0, %v1423
        %v1425 = vrcp.pop %v1362
        %v1426 = vmul.f32 1.0, %v1425
        %v1443 = vlaneseq
        %v1444 = vand.u32 %v1443, 127
        %v1445 = vlaneseq
        %v1446 = vshrl.u32 %v1445, 7
        %v1447 = vsub.s32 %v1444, %v1446
        %v1448 = vrot.slane %v1364, %v1447
        %v1449 = vadd.s32 %v1444, 4294967288
        %v1450 = vlaneseq
        %v1451 = vshrl.u32 %v1450, 7
        %v1452 = vsub.s32 %v1449, %v1451
        %v1453 = vrot.slane %v1366, %v1452
        %vm1454 = vcmask 130112
        %v1455 = vsel %vm1454, %v1453, %v1448
        %v1456 = vadd.s32 %v1444, 4294967280
        %v1457 = vlaneseq
        %v1458 = vshrl.u32 %v1457, 7
        %v1459 = vsub.s32 %v1456, %v1458
        %v1460 = vrot.slane %v1368, %v1459
        %vm1461 = vcmask 195712
        %v1462 = vsel %vm1461, %v1460, %v1455
        %v1463 = vadd.s32 %v1444, 4294967272
        %v1464 = vlaneseq
        %v1465 = vshrl.u32 %v1464, 7
        %v1466 = vsub.s32 %v1463, %v1465
        %v1467 = vrot.slane %v1370, %v1466
        %vm1468 = vcmask 261312
        %v1469 = vsel %vm1468, %v1467, %v1462
        %v1470 = vadd.s32 %v1444, 4294967264
        %v1471 = vlaneseq
        %v1472 = vshrl.u32 %v1471, 7
        %v1473 = vsub.s32 %v1470, %v1472
        %v1474 = vrot.slane %v1372, %v1473
        %vm1475 = vcmask 326912
        %v1476 = vsel %vm1475, %v1474, %v1469
        %v1477 = vadd.s32 %v1444, 4294967256
        %v1478 = vlaneseq
        %v1479 = vshrl.u32 %v1478, 7
        %v1480 = vsub.s32 %v1477, %v1479
        %v1481 = vrot.slane %v1374, %v1480
        %vm1482 = vcmask 392512
        %v1483 = vsel %vm1482, %v1481, %v1476
        %v1484 = vadd.s32 %v1444, 4294967248
        %v1485 = vlaneseq
        %v1486 = vshrl.u32 %v1485, 7
        %v1487 = vsub.s32 %v1484, %v1486
        %v1488 = vrot.slane %v1376, %v1487
        %vm1489 = vcmask 458112
        %v1490 = vsel %vm1489, %v1488, %v1483
        %v1491 = vadd.s32 %v1444, 4294967240
        %v1492 = vlaneseq
        %v1493 = vshrl.u32 %v1492, 7
        %v1494 = vsub.s32 %v1491, %v1493
        %v1495 = vrot.slane %v1378, %v1494
        %vm1496 = vcmask 523712
        %v1497 = vsel %vm1496, %v1495, %v1490
        %v1498 = vadd.s32 %v1444, 4294967232
        %v1499 = vlaneseq
        %v1500 = vshrl.u32 %v1499, 7
        %v1501 = vsub.s32 %v1498, %v1500
        %v1502 = vrot.slane %v1380, %v1501
        %vm1503 = vcmask 589312
        %v1504 = vsel %vm1503, %v1502, %v1497
        %v1505 = vadd.s32 %v1444, 4294967224
        %v1506 = vlaneseq
        %v1507 = vshrl.u32 %v1506, 7
        %v1508 = vsub.s32 %v1505, %v1507
        %v1509 = vrot.slane %v1382, %v1508
        %vm1510 = vcmask 654912
        %v1511 = vsel %vm1510, %v1509, %v1504
        %v1512 = vadd.s32 %v1444, 4294967216
        %v1513 = vlaneseq
        %v1514 = vshrl.u32 %v1513, 7
        %v1515 = vsub.s32 %v1512, %v1514
        %v1516 = vrot.slane %v1384, %v1515
        %vm1517 = vcmask 720512
        %v1518 = vsel %vm1517, %v1516, %v1511
        %v1519 = vadd.s32 %v1444, 4294967208
        %v1520 = vlaneseq
        %v1521 = vshrl.u32 %v1520, 7
        %v1522 = vsub.s32 %v1519, %v1521
        %v1523 = vrot.slane %v1386, %v1522
        %vm1524 = vcmask 786112
        %v1525 = vsel %vm1524, %v1523, %v1518
        %v1526 = vadd.s32 %v1444, 4294967200
        %v1527 = vlaneseq
        %v1528 = vshrl.u32 %v1527, 7
        %v1529 = vsub.s32 %v1526, %v1528
        %v1530 = vrot.slane %v1388, %v1529
        %vm1531 = vcmask 851712
        %v1532 = vsel %vm1531, %v1530, %v1525
        %v1533 = vadd.s32 %v1444, 4294967192
        %v1534 = vlaneseq
        %v1535 = vshrl.u32 %v1534, 7
        %v1536 = vsub.s32 %v1533, %v1535
        %v1537 = vrot.slane %v1390, %v1536
        %vm1538 = vcmask 917312
        %v1539 = vsel %vm1538, %v1537, %v1532
        %v1540 = vadd.s32 %v1444, 4294967184
        %v1541 = vlaneseq
        %v1542 = vshrl.u32 %v1541, 7
        %v1543 = vsub.s32 %v1540, %v1542
        %v1544 = vrot.slane %v1392, %v1543
        %vm1545 = vcmask 982912
        %v1546 = vsel %vm1545, %v1544, %v1539
        %v1547 = vadd.s32 %v1444, 4294967176
        %v1548 = vlaneseq
        %v1549 = vshrl.u32 %v1548, 7
        %v1550 = vsub.s32 %v1547, %v1549
        %v1551 = vrot.slane %v1394, %v1550
        %vm1552 = vcmask 1048512
        %v1553 = vsel %vm1552, %v1551, %v1546
        %1554 = vst [vmem:[%s285] ss:$2 sm:$0x1] %v1553
        %v1571 = vlaneseq
        %v1572 = vshrl.u32 %v1571, 7
        %v1573 = vsub.s32 %v1444, %v1572
        %v1574 = vrot.slane %v1396, %v1573
        %v1575 = vlaneseq
        %v1576 = vshrl.u32 %v1575, 7
        %v1577 = vsub.s32 %v1449, %v1576
        %v1578 = vrot.slane %v1398, %v1577
        %v1579 = vsel %vm1454, %v1578, %v1574
        %v1580 = vlaneseq
        %v1581 = vshrl.u32 %v1580, 7
        %v1582 = vsub.s32 %v1456, %v1581
        %v1583 = vrot.slane %v1400, %v1582
        %v1584 = vsel %vm1461, %v1583, %v1579
        %v1585 = vlaneseq
        %v1586 = vshrl.u32 %v1585, 7
        %v1587 = vsub.s32 %v1463, %v1586
        %v1588 = vrot.slane %v1402, %v1587
        %v1589 = vsel %vm1468, %v1588, %v1584
        %v1590 = vlaneseq
        %v1591 = vshrl.u32 %v1590, 7
        %v1592 = vsub.s32 %v1470, %v1591
        %v1593 = vrot.slane %v1404, %v1592
        %v1594 = vsel %vm1475, %v1593, %v1589
        %v1595 = vlaneseq
        %v1596 = vshrl.u32 %v1595, 7
        %v1597 = vsub.s32 %v1477, %v1596
        %v1598 = vrot.slane %v1406, %v1597
        %v1599 = vsel %vm1482, %v1598, %v1594
        %v1600 = vlaneseq
        %v1601 = vshrl.u32 %v1600, 7
        %v1602 = vsub.s32 %v1484, %v1601
        %v1603 = vrot.slane %v1408, %v1602
        %v1604 = vsel %vm1489, %v1603, %v1599
        %v1605 = vlaneseq
        %v1606 = vshrl.u32 %v1605, 7
        %v1607 = vsub.s32 %v1491, %v1606
        %v1608 = vrot.slane %v1410, %v1607
        %v1609 = vsel %vm1496, %v1608, %v1604
        %v1610 = vlaneseq
        %v1611 = vshrl.u32 %v1610, 7
        %v1612 = vsub.s32 %v1498, %v1611
        %v1613 = vrot.slane %v1412, %v1612
        %v1614 = vsel %vm1503, %v1613, %v1609
        %v1615 = vlaneseq
        %v1616 = vshrl.u32 %v1615, 7
        %v1617 = vsub.s32 %v1505, %v1616
        %v1618 = vrot.slane %v1414, %v1617
        %v1619 = vsel %vm1510, %v1618, %v1614
        %v1620 = vlaneseq
        %v1621 = vshrl.u32 %v1620, 7
        %v1622 = vsub.s32 %v1512, %v1621
        %v1623 = vrot.slane %v1416, %v1622
        %v1624 = vsel %vm1517, %v1623, %v1619
        %v1625 = vlaneseq
        %v1626 = vshrl.u32 %v1625, 7
        %v1627 = vsub.s32 %v1519, %v1626
        %v1628 = vrot.slane %v1418, %v1627
        %v1629 = vsel %vm1524, %v1628, %v1624
        %v1630 = vlaneseq
        %v1631 = vshrl.u32 %v1630, 7
        %v1632 = vsub.s32 %v1526, %v1631
        %v1633 = vrot.slane %v1420, %v1632
        %v1634 = vsel %vm1531, %v1633, %v1629
        %v1635 = vlaneseq
        %v1636 = vshrl.u32 %v1635, 7
        %v1637 = vsub.s32 %v1533, %v1636
        %v1638 = vrot.slane %v1422, %v1637
        %v1639 = vsel %vm1538, %v1638, %v1634
        %v1640 = vlaneseq
        %v1641 = vshrl.u32 %v1640, 7
        %v1642 = vsub.s32 %v1540, %v1641
        %v1643 = vrot.slane %v1424, %v1642
        %v1644 = vsel %vm1545, %v1643, %v1639
        %v1645 = vlaneseq
        %v1646 = vshrl.u32 %v1645, 7
        %v1647 = vsub.s32 %v1547, %v1646
        %v1648 = vrot.slane %v1426, %v1647
        %v1649 = vsel %vm1552, %v1648, %v1644
        %s1650 = scalar_lea.vmem %s285, 1 [#allocation3]
        %1651 = vst [vmem:[%s1650] ss:$2 sm:$0x1] %v1649
        %s1652 = sand.u32 %s182, 1
        %s1653 = scalar_lea.sflag [#allocation4], %s1652
        %s1654 = sand.u32 %s182, 1
        %s1655 = smul.addr %s1654, 2
        %s1656 = scalar_lea.vmem [#allocation3], %s1655
        // Predicated region
        $region49: #{model_binary_classification_forward.1} parent=47 // pred_check
          %p1657 = pneg %p192
        $region50: #{model_binary_classification_forward.1} parent=47 // pred_check_branch
          %1659 = sbr.rel (%p1657) target = $region52
        $region51: #{model_binary_classification_forward.1} parent=47 // pred_region
          %s1661 = ssub.s32 32, 32
          %1662 = vsyncadd %s1653, %s1661
          %s1663 = smul.addr %s22, 32
          %s1664 = scalar_lea.hbm %s7, %s1663
          %s1666 = sshll.u32 %s1656, 4
          %s1667 = int_to_ptr.vmem [resolvable:$true] %s1666
          %1669 = dma.vmem_to_hbm [thread:$0]  %s1667, 32, %s1664, %s1653
        $region52: #{model_binary_classification_forward.1} parent=47 // pred_fallthru
          _
      $region48: #{model_binary_classification_forward.1} parent=5 // pred_fallthru
        _
      %p1670 = scmp.le.s32.totalorder 2, %s17
      // Predicated region
      $region53: #{model_binary_classification_forward.1} parent=5 // pred_check
        %p1671 = pneg %p1670
      $region54: #{model_binary_classification_forward.1} parent=5 // pred_check_branch
        %1673 = sbr.rel (%p1671) target = $region56
      $region55: #{model_binary_classification_forward.1} parent=5 // pred_region
        %s1674 = ssub.s32 %s17, 2
        // Predicated region
        $region57: #{model_binary_classification_forward.1} parent=55 // pred_check
          %p1675 = pneg %p198
        $region58: #{model_binary_classification_forward.1} parent=55 // pred_check_branch
          %1677 = sbr.rel (%p1675) target = $region60
        $region59: #{model_binary_classification_forward.1} parent=55 // pred_region
          %s1678 = sand.u32 %s183, 1
          %s1679 = scalar_lea.sflag [#allocation4], %s1678
          %s1680 = sand.u32 %s183, 1
          %s1681 = smul.addr %s1680, 2
          %s1682 = scalar_lea.vmem [#allocation3], %s1681
          %1683 = dma.done %s1679, 32
        $region60: #{model_binary_classification_forward.1} parent=55 // pred_fallthru
          _
      $region56: #{model_binary_classification_forward.1} parent=5 // pred_fallthru
        _
    $region6: #{model_binary_classification_forward.1} parent=1 // loop_footer
      %s21 = sadd.s32 1, %s17
    $region7: #{model_binary_classification_forward.1} parent=1 // loop_footer_branch
      %16 = sbr.rel target = $region3
    $region8: #{model_binary_classification_forward.1} parent=1 // loop_exit
      _
    %1684 = vsyncpa [#allocation4], 1
    %s1685 = scalar_lea.sflag [#allocation4], 1
    %1686 = vsyncpa %s1685, 1

</llo_original>
